<compile_context>
chip_gen: v7x
topology: tpu7x:2x2x1
jax: 0.10.0
libtpu: 0.0.40
codegen_flags: <defaults>
</compile_context>

<pallas_src>
import functools
import math

import jax
import jax.numpy as jnp
import numpy as np
from jax import lax
from jax.experimental import pallas as pl
from jax.experimental.pallas import tpu as pltpu


def _band_projection_kernel(x_ref, w1_ref, w2_ref, beff_ref, o_ref, acc_ref):
    # x_ref   : (1, C_in, block_t)  -- x[b, :, f, t0:t0+block_t]
    # w1_ref  : (C_out, C_in)       -- 1x1 conv weight
    # w2_ref  : (1, C_out, K)       -- band-f slice of the re-ordered Linear weight
    # beff_ref: (1, K)              -- fused conv+linear bias
    # o_ref   : (1, block_t, K)     -- out[b, t0:t0+block_t, :]
    # acc_ref : (block_t, K) f32 scratch, resident across the F reduction axis
    f = pl.program_id(2)

    @pl.when(f == 0)
    def _init():
        acc_ref[...] = jnp.zeros_like(acc_ref)

    x_slab = x_ref[0]                                        # (C_in, block_t)

    # Stage 1: 1x1 conv for this sub-band -> (C_out, block_t), f32 accumulate.
    z = jnp.dot(w1_ref[...], x_slab,
                preferred_element_type=jnp.float32)

    # Stage 2: this band's contribution to the projection.
    #   acc[t, k] += sum_co z[co, t] * w2_f[co, k]
    zt = jnp.transpose(z)                                    # (block_t, C_out)
    w2_f = w2_ref[0]                                         # (C_out, K), f32
    acc_ref[...] += jnp.dot(zt, w2_f,
                            preferred_element_type=jnp.float32)

    @pl.when(f == pl.num_programs(2) - 1)
    def _finalize():
        o_ref[0] = (acc_ref[...] + beff_ref[...]).astype(o_ref.dtype)


@functools.partial(jax.jit, static_argnames=("block_t",))
def band_projection(x, conv_w, conv_b, lin_w, lin_b, *, block_t=None):
    """Fused BandProjection forward.

    Args:
      x:      (B, C_in, F, T)
      conv_w: (C_out, C_in, 1, 1)   1x1 conv weight (torch layout)
      conv_b: (C_out,)
      lin_w:  (K, C_out * F)        Linear weight (torch layout: out, in)
      lin_b:  (K,)
    Returns:
      (B, T, K) in x.dtype
    """
    B, C_in, F, T = x.shape
    C_out = conv_w.shape[0]
    K = lin_w.shape[0]
    assert conv_w.shape[1] == C_in
    assert lin_w.shape[1] == C_out * F

    # ---- time tiling (largest clean tile; sweep 128/256/512 in production) ----
    if block_t is None:
        block_t = 128
        for cand in (512, 256):
            if T % cand == 0:
                block_t = cand
                break

    T_p = T
    if T_p % block_t != 0:
        # TODO(synk): padding copies x along T; feed T as a multiple of 128 to
        # avoid the extra HBM pass in production.
        pad = block_t - (T_p % block_t)
        x = jnp.pad(x, ((0, 0), (0, 0), (0, 0), (0, pad)))
        T_p = T + pad
    nt = T_p // block_t

    # ---- tiny weight rearrangements (done once, outside the hot loop) --------
    out_dtype = x.dtype
    w1 = conv_w.reshape(C_out, C_in).astype(x.dtype)           # 1x1 conv == matmul
    w2 = lin_w.reshape(K, C_out, F)                            # in-feature j = co*F + f
    w2r = jnp.transpose(w2, (2, 1, 0)).astype(jnp.float32)     # (F, C_out, K)
    # Fold conv bias through the Linear:  beff = lin_b + sum_{co,f} W2[k,co*F+f]*b1[co]
    beff = (lin_b.astype(jnp.float32)
            + jnp.einsum("kof,o->k", w2.astype(jnp.float32),
                         conv_b.astype(jnp.float32),
                         precision=lax.Precision.HIGHEST))
    beff = beff.reshape(1, K)

    # Free view: last-axis flat index = f * T_p + t  (so block index = f*nt + tb)
    xv = x.reshape(B, C_in, F * T_p)

    flops = 2 * B * T_p * F * C_in * C_out + 2 * B * T_p * F * C_out * K
    bytes_accessed = (xv.size * xv.dtype.itemsize
                      + B * T_p * K * jnp.dtype(out_dtype).itemsize
                      + w1.size * w1.dtype.itemsize
                      + w2r.size * 4 + beff.size * 4)

    out = pl.pallas_call(
        _band_projection_kernel,
        out_shape=jax.ShapeDtypeStruct((B, T_p, K), out_dtype),
        grid_spec=pltpu.PrefetchScalarGridSpec(
            num_scalar_prefetch=0,
            grid=(B, nt, F),
            in_specs=[
                # x[b, :, f, tb*block_t : (tb+1)*block_t]
                pl.BlockSpec((1, C_in, block_t),
                             lambda b, tb, f: (b, 0, f * nt + tb)),
                pl.BlockSpec((C_out, C_in), lambda b, tb, f: (0, 0)),
                pl.BlockSpec((1, C_out, K), lambda b, tb, f: (f, 0, 0)),
                pl.BlockSpec((1, K), lambda b, tb, f: (0, 0)),
            ],
            out_specs=pl.BlockSpec((1, block_t, K),
                                   lambda b, tb, f: (b, tb, 0)),
            scratch_shapes=[pltpu.VMEM((block_t, K), jnp.float32)],
        ),
        compiler_params=pltpu.CompilerParams(
            dimension_semantics=("parallel", "parallel", "arbitrary"),
        ),
        cost_estimate=pl.CostEstimate(
            flops=flops, transcendentals=0, bytes_accessed=bytes_accessed),
    )(xv, w1, w2r, beff)

    return out[:, :T, :] if T_p != T else out


if __name__ == "__main__":
    # Module defaults: in_channels=512, out_channels=16, subband_num=17,
    # out_freq_bins=513; small batch / time frames for the demo.
    in_channels, out_channels = 512, 16
    subband_num, out_freq_bins = 17, 513
    B, T = 2, 128

    key = jax.random.PRNGKey(0)
    k_x, k_cw, k_cb, k_lw, k_lb = jax.random.split(key, 5)

    x = jax.random.normal(k_x, (B, in_channels, subband_num, T), dtype=jnp.float32)

    # nn.Conv2d / nn.Linear style uniform(-1/sqrt(fan_in), 1/sqrt(fan_in)) init.
    b1 = 1.0 / math.sqrt(in_channels)
    conv_w = jax.random.uniform(k_cw, (out_channels, in_channels, 1, 1),
                                minval=-b1, maxval=b1, dtype=jnp.float32)
    conv_b = jax.random.uniform(k_cb, (out_channels,),
                                minval=-b1, maxval=b1, dtype=jnp.float32)
    in_features = out_channels * subband_num
    b2 = 1.0 / math.sqrt(in_features)
    lin_w = jax.random.uniform(k_lw, (out_freq_bins, in_features),
                               minval=-b2, maxval=b2, dtype=jnp.float32)
    lin_b = jax.random.uniform(k_lb, (out_freq_bins,),
                               minval=-b2, maxval=b2, dtype=jnp.float32)

    out = band_projection(x, conv_w, conv_b, lin_w, lin_b)
    out = jax.block_until_ready(out)
    assert out.shape == (B, T, out_freq_bins)

    # Pure-JAX reference of the PyTorch forward.
    hi = lax.Precision.HIGHEST
    w1_ref = conv_w[:, :, 0, 0]
    y = jnp.einsum("oc,bcft->boft", w1_ref, x, precision=hi) \
        + conv_b[None, :, None, None]
    y = jnp.transpose(y, (0, 3, 1, 2)).reshape(B, T, in_features)
    ref = jnp.einsum("btj,kj->btk", y, lin_w, precision=hi) + lin_b[None, None, :]

    np.testing.assert_allclose(np.asarray(out), np.asarray(ref),
                               rtol=2e-4, atol=2e-4)
    print("KERNEL_OK")
</pallas_src>

<mosaic_0001>
module attributes {stable_mosaic.version = 11 : i64} {
  func.func @_band_projection_kernel(%arg0: i32, %arg1: i32, %arg2: i32, %arg3: memref<1x512x128xf32, #tpu.memory_space<vmem>>, %arg4: memref<16x512xf32, #tpu.memory_space<vmem>>, %arg5: memref<1x16x513xf32, #tpu.memory_space<vmem>>, %arg6: memref<1x513xf32, #tpu.memory_space<vmem>>, %arg7: memref<1x128x513xf32, #tpu.memory_space<vmem>>, %arg8: memref<128x513xf32, #tpu.memory_space<vmem>>) attributes {dimension_semantics = [#tpu.dimension_semantics<parallel>, #tpu.dimension_semantics<parallel>, #tpu.dimension_semantics<arbitrary>], iteration_bounds = array<i64: 2, 1, 17>, scalar_prefetch = 0 : i64, scratch_operands = 1 : i64, tpu.core_type = #tpu.core_type<tc>, window_params = [{transform_indices = @transform_0, window_bounds = array<i64: 1, 512, 128>}, {pipeline_mode = #tpu.pipeline_mode<synchronous>, transform_indices = @transform_1, window_bounds = array<i64: 16, 512>}, {transform_indices = @transform_2, window_bounds = array<i64: 1, 16, 513>}, {pipeline_mode = #tpu.pipeline_mode<synchronous>, transform_indices = @transform_3, window_bounds = array<i64: 1, 513>}, {transform_indices = @transform_4, window_bounds = array<i64: 1, 128, 513>}]} {
    %c0_i32 = arith.constant 0 : i32
    %0 = arith.cmpi eq, %arg2, %c0_i32 : i32
    %1 = arith.extui %0 : i1 to i32
    %c0_i32_0 = arith.constant 0 : i32
    %2 = arith.cmpi ne, %1, %c0_i32_0 : i32
    scf.if %2 {
      %cst_14 = arith.constant 0.000000e+00 : f32
      %17 = vector.broadcast %cst_14 : f32 to vector<128x513xf32>
      %c0_15 = arith.constant 0 : index
      %c0_16 = arith.constant 0 : index
      %18 = vector.load %arg8[%c0_15, %c0_16] : memref<128x513xf32, #tpu.memory_space<vmem>>, vector<128x513xf32>
      tpu.vector_store %arg8[%c0_15, %c0_16], %17 {strides = array<i32>} : memref<128x513xf32, #tpu.memory_space<vmem>>, vector<128x513xf32>,
    } else {
    }
    %c0 = arith.constant 0 : index
    %c0_1 = arith.constant 0 : index
    %c0_2 = arith.constant 0 : index
    %3 = vector.load %arg3[%c0, %c0_1, %c0_2] : memref<1x512x128xf32, #tpu.memory_space<vmem>>, vector<1x512x128xf32>
    %4 = vector.shape_cast %3 : vector<1x512x128xf32> to vector<512x128xf32>
    %c0_3 = arith.constant 0 : index
    %c0_4 = arith.constant 0 : index
    %5 = vector.load %arg4[%c0_3, %c0_4] : memref<16x512xf32, #tpu.memory_space<vmem>>, vector<16x512xf32>
    %cst = arith.constant dense<0.000000e+00> : vector<16x128xf32>
    %6 = tpu.matmul %5, %4, %cst {dimension_numbers = #tpu.dot_dimension_numbers<[1], [0], [0], [1], [0, 0, 1, 1], [], []>} : vector<16x512xf32>, vector<512x128xf32>, vector<16x128xf32> -> vector<16x128xf32>
    %7 = tpu.transpose %6, [1, 0] : vector<16x128xf32> -> vector<128x16xf32>
    %c0_5 = arith.constant 0 : index
    %c0_6 = arith.constant 0 : index
    %c0_7 = arith.constant 0 : index
    %8 = vector.load %arg5[%c0_5, %c0_6, %c0_7] : memref<1x16x513xf32, #tpu.memory_space<vmem>>, vector<1x16x513xf32>
    %9 = vector.shape_cast %8 : vector<1x16x513xf32> to vector<16x513xf32>
    %c0_8 = arith.constant 0 : index
    %c0_9 = arith.constant 0 : index
    %10 = vector.load %arg8[%c0_8, %c0_9] : memref<128x513xf32, #tpu.memory_space<vmem>>, vector<128x513xf32>
    %cst_10 = arith.constant dense<0.000000e+00> : vector<128x513xf32>
    %11 = tpu.matmul %7, %9, %cst_10 {dimension_numbers = #tpu.dot_dimension_numbers<[1], [0], [0], [1], [0, 0, 1, 1], [], []>} : vector<128x16xf32>, vector<16x513xf32>, vector<128x513xf32> -> vector<128x513xf32>
    %12 = arith.addf %10, %11 : vector<128x513xf32>
    %c0_11 = arith.constant 0 : index
    %c0_12 = arith.constant 0 : index
    %13 = vector.load %arg8[%c0_11, %c0_12] : memref<128x513xf32, #tpu.memory_space<vmem>>, vector<128x513xf32>
    tpu.vector_store %arg8[%c0_11, %c0_12], %12 {strides = array<i32>} : memref<128x513xf32, #tpu.memory_space<vmem>>, vector<128x513xf32>,
    %c16_i32 = arith.constant 16 : i32
    %14 = arith.cmpi eq, %arg2, %c16_i32 : i32
    %15 = arith.extui %14 : i1 to i32
    %c0_i32_13 = arith.constant 0 : i32
    %16 = arith.cmpi ne, %15, %c0_i32_13 : i32
    scf.if %16 {
      %c0_14 = arith.constant 0 : index
      %c0_15 = arith.constant 0 : index
      %17 = vector.load %arg8[%c0_14, %c0_15] : memref<128x513xf32, #tpu.memory_space<vmem>>, vector<128x513xf32>
      %c0_16 = arith.constant 0 : index
      %c0_17 = arith.constant 0 : index
      %18 = vector.load %arg6[%c0_16, %c0_17] : memref<1x513xf32, #tpu.memory_space<vmem>>, vector<1x513xf32>
      %19 = vector.broadcast %18 : vector<1x513xf32> to vector<128x513xf32>
      %20 = arith.addf %17, %19 : vector<128x513xf32>
      %c0_18 = arith.constant 0 : index
      %c0_19 = arith.constant 0 : index
      %c0_20 = arith.constant 0 : index
      %21 = vector.load %arg7[%c0_18, %c0_19, %c0_20] : memref<1x128x513xf32, #tpu.memory_space<vmem>>, vector<1x128x513xf32>
      %22 = vector.shape_cast %21 : vector<1x128x513xf32> to vector<128x513xf32>
      %23 = vector.shape_cast %20 : vector<128x513xf32> to vector<1x128x513xf32>
      tpu.vector_store %arg7[%c0_18, %c0_19, %c0_20], %23 {strides = array<i32>} : memref<1x128x513xf32, #tpu.memory_space<vmem>>, vector<1x128x513xf32>,
    } else {
    }
    return
  }
  func.func @transform_0(%arg0: i32, %arg1: i32, %arg2: i32) -> (i32, i32, i32) {
    %c1_i32 = arith.constant 1 : i32
    %0 = arith.muli %arg2, %c1_i32 : i32
    %1 = arith.addi %0, %arg1 : i32
    %c0_i32 = arith.constant 0 : i32
    %c0_i32_0 = arith.constant 0 : i32
    return %arg0, %c0_i32, %1 : i32, i32, i32
  }
  func.func @transform_1(%arg0: i32, %arg1: i32, %arg2: i32) -> (i32, i32) {
    %c0_i32 = arith.constant 0 : i32
    %c0_i32_0 = arith.constant 0 : i32
    %c0_i32_1 = arith.constant 0 : i32
    return %c0_i32, %c0_i32_0 : i32, i32
  }
  func.func @transform_2(%arg0: i32, %arg1: i32, %arg2: i32) -> (i32, i32, i32) {
    %c0_i32 = arith.constant 0 : i32
    %c0_i32_0 = arith.constant 0 : i32
    %c0_i32_1 = arith.constant 0 : i32
    return %arg2, %c0_i32, %c0_i32_0 : i32, i32, i32
  }
  func.func @transform_3(%arg0: i32, %arg1: i32, %arg2: i32) -> (i32, i32) {
    %c0_i32 = arith.constant 0 : i32
    %c0_i32_0 = arith.constant 0 : i32
    %c0_i32_1 = arith.constant 0 : i32
    return %c0_i32, %c0_i32_0 : i32, i32
  }
  func.func @transform_4(%arg0: i32, %arg1: i32, %arg2: i32) -> (i32, i32, i32) {
    %c0_i32 = arith.constant 0 : i32
    %c0_i32_0 = arith.constant 0 : i32
    return %arg0, %arg1, %c0_i32 : i32, i32, i32
  }
}

</mosaic_0001>

<llo_original>
// kernel: band_projection.1
$region0: #{band_projection.1}
  #allocation0 [shape = 'u32[]', space=smem, size = 0x4, offset = 0x4, fixed_abs, tag = 'smem constant byte address 0x4 - core index']
  #allocation1 [shape = 'u32[144,128]{1,0:T(1,128)}', space=vmem, size = 0x12000, scoped, tag = 'internal scratch']
  #allocation2 [shape = 'f32[128,513]{1,0:T(8,128)}', space=vmem, size = 0x50000, scoped, tag = 'scratch operand']
  %s0 = inlined_call_operand.vmem [shape: f32[2,512,2176], index: 0, kind: input, shape index: {}]
  %s1 = inlined_call_operand.vmem [shape: f32[16,512], index: 1, kind: input, shape index: {}]
  %s2 = inlined_call_operand.vmem [shape: f32[17,16,513], index: 2, kind: input, shape index: {}]
  %s3 = inlined_call_operand.vmem [shape: f32[1,513], index: 3, kind: input, shape index: {}]
  %s4 = inlined_call_operand.vmem [shape: f32[2,128,513], index: 4, kind: output, shape index: {}]
  %s5 = sld [smem:[#allocation0]]
  $region95: #{band_projection.1} parent=0
    _
  %s7 = ssub.s32 1, %s5
  %s8 = scalar_select 0, %s7, %s5
  $region1: #{band_projection.1} parent=0
    #allocation3 [shape = 'u8[524288]{0}', space=vmem, size = 0x80000, scoped, tag = 'input window, operand 0']
    loop: start=0, step=1, limit=36
    $region2: #{band_projection.1} parent=1 // loop_pre_header
      _
    $region3: #{band_projection.1} parent=1 // loop_header
      %s10 = sphi 0, %s14
      %p11 = scmp.ge.s32.totalorder %s10, 36
      %s17 = sphi 0, %s36
      %s18 = sphi 0, %s32
      %s19 = sphi 0, %s28
      %s20 = sphi 0, %s17
      %s21 = sphi 0, %s18
      %s22 = sphi 0, %s19
      %s23 = sphi 0, %s20
      %s24 = sphi 0, %s21
      %s25 = sphi 0, %s22
      %s43 = sphi 0, %s45
      %s46 = sphi 0, %s43
      %s47 = sphi 0, %s46
      %s63 = sphi 0, %s47
      %s67 = sphi 0, %s67
      %s69 = sphi 0, %s67
      %s70 = sphi 0, %s69
      %s84 = sphi 0, %s70
      %s90 = sphi 0, %s92
      %s93 = sphi 0, %s90
      %s94 = sphi 0, %s93
      %s110 = sphi 0, %s94
      %s114 = sphi 0, %s114
      %s116 = sphi 0, %s114
      %s117 = sphi 0, %s116
      %s131 = sphi 0, %s117
      %s139 = sphi 0, %s141
      %s142 = sphi 0, %s139
      %s143 = sphi 0, %s142
      %s159 = sphi 0, %s143
    $region4: #{band_projection.1} parent=1 // loop_header_branch
      %13 = sbr.rel (%p11) target = $region8
    $region5: #{band_projection.1} parent=1 // loop_body
      %s15 = ssub.s32 %s10, 1
      %s16 = ssub.s32 %s10, 2
      %s26 = sadd.s32 1, %s19
      %p27 = scmp.ge.s32.totalorder %s26, 17
      %s28 = scalar_select %p27, 0, %s26
      %s29 = sadd.s32 1, %s18
      %s30 = scalar_select %p27, %s29, %s18
      %p31 = scmp.ge.s32.totalorder %s30, 1
      %s32 = scalar_select %p31, 0, %s30
      %s33 = sadd.s32 1, %s17
      %s34 = scalar_select %p31, %s33, %s17
      %p35 = scmp.ge.s32.totalorder %s34, 2
      %s36 = scalar_select %p35, 0, %s34
      %s37 = sadd.s32 %s19, %s18
      %s38 = sadd.s32 %s28, %s32
      %s39 = ssub.s32 %s17, %s36
      %s40 = ssub.s32 %s37, %s38
      %s41 = sor.u32 %s39, %s40
      %p42 = scmp.eq.s32.totalorder %s41, 0
      %s44 = sadd.s32 %s43, 1
      %s45 = scalar_select %p42, %s43, %s44
      %p48 = pneg %p42
      %p49 = scmp.eq.s32.totalorder %s10, 33
      %p50 = por %p48, %p49
      %p51 = scmp.ne.s32.totalorder %s43, %s46
      %p52 = scmp.eq.s32.totalorder %s10, 0
      %p53 = por %p51, %p52
      %p54 = scmp.ne.s32.totalorder %s43, %s46
      %p55 = scmp.eq.s32.totalorder %s15, 33
      %p56 = por %p54, %p55
      %p57 = scmp.ne.s32.totalorder %s46, %s47
      %p58 = scmp.eq.s32.totalorder %s15, 0
      %p59 = por %p57, %p58
      %p60 = scmp.ne.s32.totalorder %s46, %s47
      %p61 = scmp.eq.s32.totalorder %s16, 33
      %p62 = por %p60, %p61
      %p64 = scmp.ne.s32.totalorder %s47, %s63
      %p65 = scmp.eq.s32.totalorder %s16, 0
      %p66 = por %p64, %p65
      %s68 = sadd.s32 %s67, 1
      %p71 = scmp.eq.s32.totalorder %s10, 33
      %p72 = scmp.ne.s32.totalorder %s67, %s69
      %p73 = scmp.eq.s32.totalorder %s10, 0
      %p74 = por %p72, %p73
      %p75 = scmp.ne.s32.totalorder %s67, %s69
      %p76 = scmp.eq.s32.totalorder %s15, 33
      %p77 = por %p75, %p76
      %p78 = scmp.ne.s32.totalorder %s69, %s70
      %p79 = scmp.eq.s32.totalorder %s15, 0
      %p80 = por %p78, %p79
      %p81 = scmp.ne.s32.totalorder %s69, %s70
      %p82 = scmp.eq.s32.totalorder %s16, 33
      %p83 = por %p81, %p82
      %p85 = scmp.ne.s32.totalorder %s70, %s84
      %p86 = scmp.eq.s32.totalorder %s16, 0
      %p87 = por %p85, %p86
      %s88 = ssub.s32 %s19, %s28
      %p89 = scmp.eq.s32.totalorder %s88, 0
      %s91 = sadd.s32 %s90, 1
      %s92 = scalar_select %p89, %s90, %s91
      %p95 = pneg %p89
      %p96 = scmp.eq.s32.totalorder %s10, 33
      %p97 = por %p95, %p96
      %p98 = scmp.ne.s32.totalorder %s90, %s93
      %p99 = scmp.eq.s32.totalorder %s10, 0
      %p100 = por %p98, %p99
      %p101 = scmp.ne.s32.totalorder %s90, %s93
      %p102 = scmp.eq.s32.totalorder %s15, 33
      %p103 = por %p101, %p102
      %p104 = scmp.ne.s32.totalorder %s93, %s94
      %p105 = scmp.eq.s32.totalorder %s15, 0
      %p106 = por %p104, %p105
      %p107 = scmp.ne.s32.totalorder %s93, %s94
      %p108 = scmp.eq.s32.totalorder %s16, 33
      %p109 = por %p107, %p108
      %p111 = scmp.ne.s32.totalorder %s94, %s110
      %p112 = scmp.eq.s32.totalorder %s16, 0
      %p113 = por %p111, %p112
      %s115 = sadd.s32 %s114, 1
      %p118 = scmp.eq.s32.totalorder %s10, 33
      %p119 = scmp.ne.s32.totalorder %s114, %s116
      %p120 = scmp.eq.s32.totalorder %s10, 0
      %p121 = por %p119, %p120
      %p122 = scmp.ne.s32.totalorder %s114, %s116
      %p123 = scmp.eq.s32.totalorder %s15, 33
      %p124 = por %p122, %p123
      %p125 = scmp.ne.s32.totalorder %s116, %s117
      %p126 = scmp.eq.s32.totalorder %s15, 0
      %p127 = por %p125, %p126
      %p128 = scmp.ne.s32.totalorder %s116, %s117
      %p129 = scmp.eq.s32.totalorder %s16, 33
      %p130 = por %p128, %p129
      %p132 = scmp.ne.s32.totalorder %s117, %s131
      %p133 = scmp.eq.s32.totalorder %s16, 0
      %p134 = por %p132, %p133
      %s135 = ssub.s32 %s17, %s36
      %s136 = ssub.s32 %s18, %s32
      %s137 = sor.u32 %s135, %s136
      %p138 = scmp.eq.s32.totalorder %s137, 0
      %s140 = sadd.s32 %s139, 1
      %s141 = scalar_select %p138, %s139, %s140
      %p144 = pneg %p138
      %p145 = scmp.eq.s32.totalorder %s10, 33
      %p146 = por %p144, %p145
      %p147 = scmp.ne.s32.totalorder %s139, %s142
      %p148 = scmp.eq.s32.totalorder %s10, 0
      %p149 = por %p147, %p148
      %p150 = scmp.ne.s32.totalorder %s139, %s142
      %p151 = scmp.eq.s32.totalorder %s15, 33
      %p152 = por %p150, %p151
      %p153 = scmp.ne.s32.totalorder %s142, %s143
      %p154 = scmp.eq.s32.totalorder %s15, 0
      %p155 = por %p153, %p154
      %p156 = scmp.ne.s32.totalorder %s142, %s143
      %p157 = scmp.eq.s32.totalorder %s16, 33
      %p158 = por %p156, %p157
      %p160 = scmp.ne.s32.totalorder %s143, %s159
      %p161 = scmp.eq.s32.totalorder %s16, 0
      %p162 = por %p160, %p161
      %p163 = scmp.le.s32.totalorder 1, %s10
      %p164 = scmp.lt.s32.totalorder %s10, 35
      %p165 = pnand %p163, %p164
      %p166 = pneg %p165
      // Predicated region
      $region9: #{band_projection.1} parent=5 // pred_check
        _
      $region10: #{band_projection.1} parent=5 // pred_check_branch
        %168 = sbr.rel (%p165) target = $region12
      $region11: #{band_projection.1} parent=5 // pred_region
        %s169 = ssub.s32 %s10, 1
        // Predicated region
        $region13: #{band_projection.1} parent=11 // pred_check
          %p170 = pneg %p80
        $region14: #{band_projection.1} parent=11 // pred_check_branch
          %172 = sbr.rel (%p170) target = $region16
        $region15: #{band_projection.1} parent=11 // pred_region
          _
        $region16: #{band_projection.1} parent=11 // pred_fallthru
          _
        // Predicated region
        $region17: #{band_projection.1} parent=11 // pred_check
          %p173 = pneg %p127
        $region18: #{band_projection.1} parent=11 // pred_check_branch
          %175 = sbr.rel (%p173) target = $region20
        $region19: #{band_projection.1} parent=11 // pred_region
          _
        $region20: #{band_projection.1} parent=11 // pred_fallthru
          _
      $region12: #{band_projection.1} parent=5 // pred_fallthru
        _
      %p176 = scmp.lt.s32.totalorder %s10, 34
      // Predicated region
      $region21: #{band_projection.1} parent=5 // pred_check
        %p177 = pneg %p176
      $region22: #{band_projection.1} parent=5 // pred_check_branch
        %179 = sbr.rel (%p177) target = $region24
      $region23: #{band_projection.1} parent=5 // pred_region
        // Predicated region
        $region25: #{band_projection.1} parent=23 // pred_check
          %p180 = pneg %p53
        $region26: #{band_projection.1} parent=23 // pred_check_branch
          %182 = sbr.rel (%p180) target = $region28
        $region27: #{band_projection.1} parent=23 // pred_region
          %s183 = sand.u32 %s43, 1
          %s184 = sand.u32 %s43, 1
          %s185 = smul.addr %s184, 512
          %s186 = scalar_lea.vmem [#allocation3], %s185
          %s187 = sadd.s32 %s19, %s18
          %s188 = smul.addr %s17, 1088
          %s189 = sadd.s32 %s187, %s188
          %s190 = smul.addr %s189, 8
          %s191 = scalar_lea.vmem %s0, %s190
          // Predicated region
          $region29: #{band_projection.1} parent=27 // pred_check
            _
          $region30: #{band_projection.1} parent=27 // pred_check_branch
            %193 = sbr.rel (0) target = $region32
          $region31: #{band_projection.1} parent=27 // pred_region
            // Predicated region
            $region33: #{band_projection.1} parent=31 // pred_check
              _
            $region34: #{band_projection.1} parent=31 // pred_check_branch
              %195 = sbr.rel (0) target = $region36
            $region35: #{band_projection.1} parent=31 // pred_region
              // Predicated region
              $region48: #{band_projection.1} parent=35 // pred_check
                _
              $region49: #{band_projection.1} parent=35 // pred_check_branch
                %336 = sbr.rel (0) target = $region51
              $region50: #{band_projection.1} parent=35 // pred_region
                loop: start=0, step=1, limit=1
                $region52: #{band_projection.1} parent=50 // loop_pre_header
                  _
                $region53: #{band_projection.1} parent=50 // loop_header
                  %s338 = sphi 0, %s342
                  %p339 = scmp.ge.s32.totalorder %s338, 1
                  %s343 = sphi %s191, %s191
                  %s344 = sphi %s186, %s186
                $region54: #{band_projection.1} parent=50 // loop_header_branch
                  %341 = sbr.rel (%p339) target = $region58
                $region55: #{band_projection.1} parent=50 // loop_body
                  %v345 = vld [vmem:[%s343] sm:$0xff]
                  %346 = vst [vmem:[%s344] sm:$0xff] %v345
                  %v347 = vld [vmem:[%s343 + $0x88] sm:$0xff]
                  %348 = vst [vmem:[%s344 + $0x8] sm:$0xff] %v347
                  %v349 = vld [vmem:[%s343 + $0x110] sm:$0xff]
                  %350 = vst [vmem:[%s344 + $0x10] sm:$0xff] %v349
                  %v351 = vld [vmem:[%s343 + $0x198] sm:$0xff]
                  %352 = vst [vmem:[%s344 + $0x18] sm:$0xff] %v351
                  %v353 = vld [vmem:[%s343 + $0x220] sm:$0xff]
                  %354 = vst [vmem:[%s344 + $0x20] sm:$0xff] %v353
                  %v355 = vld [vmem:[%s343 + $0x2a8] sm:$0xff]
                  %356 = vst [vmem:[%s344 + $0x28] sm:$0xff] %v355
                  %v357 = vld [vmem:[%s343 + $0x330] sm:$0xff]
                  %358 = vst [vmem:[%s344 + $0x30] sm:$0xff] %v357
                  %v359 = vld [vmem:[%s343 + $0x3b8] sm:$0xff]
                  %360 = vst [vmem:[%s344 + $0x38] sm:$0xff] %v359
                  %v361 = vld [vmem:[%s343 + $0x440] sm:$0xff]
                  %362 = vst [vmem:[%s344 + $0x40] sm:$0xff] %v361
                  %v363 = vld [vmem:[%s343 + $0x4c8] sm:$0xff]
                  %364 = vst [vmem:[%s344 + $0x48] sm:$0xff] %v363
                  %v365 = vld [vmem:[%s343 + $0x550] sm:$0xff]
                  %366 = vst [vmem:[%s344 + $0x50] sm:$0xff] %v365
                  %v367 = vld [vmem:[%s343 + $0x5d8] sm:$0xff]
                  %368 = vst [vmem:[%s344 + $0x58] sm:$0xff] %v367
                  %v369 = vld [vmem:[%s343 + $0x660] sm:$0xff]
                  %370 = vst [vmem:[%s344 + $0x60] sm:$0xff] %v369
                  %v371 = vld [vmem:[%s343 + $0x6e8] sm:$0xff]
                  %372 = vst [vmem:[%s344 + $0x68] sm:$0xff] %v371
                  %v373 = vld [vmem:[%s343 + $0x770] sm:$0xff]
                  %374 = vst [vmem:[%s344 + $0x70] sm:$0xff] %v373
                  %v375 = vld [vmem:[%s343 + $0x7f8] sm:$0xff]
                  %376 = vst [vmem:[%s344 + $0x78] sm:$0xff] %v375
                  %v377 = vld [vmem:[%s343 + $0x880] sm:$0xff]
                  %378 = vst [vmem:[%s344 + $0x80] sm:$0xff] %v377
                  %v379 = vld [vmem:[%s343 + $0x908] sm:$0xff]
                  %380 = vst [vmem:[%s344 + $0x88] sm:$0xff] %v379
                  %v381 = vld [vmem:[%s343 + $0x990] sm:$0xff]
                  %382 = vst [vmem:[%s344 + $0x90] sm:$0xff] %v381
                  %v383 = vld [vmem:[%s343 + $0xa18] sm:$0xff]
                  %384 = vst [vmem:[%s344 + $0x98] sm:$0xff] %v383
                  %v385 = vld [vmem:[%s343 + $0xaa0] sm:$0xff]
                  %386 = vst [vmem:[%s344 + $0xa0] sm:$0xff] %v385
                  %v387 = vld [vmem:[%s343 + $0xb28] sm:$0xff]
                  %388 = vst [vmem:[%s344 + $0xa8] sm:$0xff] %v387
                  %v389 = vld [vmem:[%s343 + $0xbb0] sm:$0xff]
                  %390 = vst [vmem:[%s344 + $0xb0] sm:$0xff] %v389
                  %v391 = vld [vmem:[%s343 + $0xc38] sm:$0xff]
                  %392 = vst [vmem:[%s344 + $0xb8] sm:$0xff] %v391
                  %v393 = vld [vmem:[%s343 + $0xcc0] sm:$0xff]
                  %394 = vst [vmem:[%s344 + $0xc0] sm:$0xff] %v393
                  %v395 = vld [vmem:[%s343 + $0xd48] sm:$0xff]
                  %396 = vst [vmem:[%s344 + $0xc8] sm:$0xff] %v395
                  %v397 = vld [vmem:[%s343 + $0xdd0] sm:$0xff]
                  %398 = vst [vmem:[%s344 + $0xd0] sm:$0xff] %v397
                  %v399 = vld [vmem:[%s343 + $0xe58] sm:$0xff]
                  %400 = vst [vmem:[%s344 + $0xd8] sm:$0xff] %v399
                  %v401 = vld [vmem:[%s343 + $0xee0] sm:$0xff]
                  %402 = vst [vmem:[%s344 + $0xe0] sm:$0xff] %v401
                  %v403 = vld [vmem:[%s343 + $0xf68] sm:$0xff]
                  %404 = vst [vmem:[%s344 + $0xe8] sm:$0xff] %v403
                  %v405 = vld [vmem:[%s343 + $0xff0] sm:$0xff]
                  %406 = vst [vmem:[%s344 + $0xf0] sm:$0xff] %v405
                  %v407 = vld [vmem:[%s343 + $0x1078] sm:$0xff]
                  %408 = vst [vmem:[%s344 + $0xf8] sm:$0xff] %v407
                  %v409 = vld [vmem:[%s343 + $0x1100] sm:$0xff]
                  %410 = vst [vmem:[%s344 + $0x100] sm:$0xff] %v409
                  %v411 = vld [vmem:[%s343 + $0x1188] sm:$0xff]
                  %412 = vst [vmem:[%s344 + $0x108] sm:$0xff] %v411
                  %v413 = vld [vmem:[%s343 + $0x1210] sm:$0xff]
                  %414 = vst [vmem:[%s344 + $0x110] sm:$0xff] %v413
                  %v415 = vld [vmem:[%s343 + $0x1298] sm:$0xff]
                  %416 = vst [vmem:[%s344 + $0x118] sm:$0xff] %v415
                  %v417 = vld [vmem:[%s343 + $0x1320] sm:$0xff]
                  %418 = vst [vmem:[%s344 + $0x120] sm:$0xff] %v417
                  %v419 = vld [vmem:[%s343 + $0x13a8] sm:$0xff]
                  %420 = vst [vmem:[%s344 + $0x128] sm:$0xff] %v419
                  %v421 = vld [vmem:[%s343 + $0x1430] sm:$0xff]
                  %422 = vst [vmem:[%s344 + $0x130] sm:$0xff] %v421
                  %v423 = vld [vmem:[%s343 + $0x14b8] sm:$0xff]
                  %424 = vst [vmem:[%s344 + $0x138] sm:$0xff] %v423
                  %v425 = vld [vmem:[%s343 + $0x1540] sm:$0xff]
                  %426 = vst [vmem:[%s344 + $0x140] sm:$0xff] %v425
                  %v427 = vld [vmem:[%s343 + $0x15c8] sm:$0xff]
                  %428 = vst [vmem:[%s344 + $0x148] sm:$0xff] %v427
                  %v429 = vld [vmem:[%s343 + $0x1650] sm:$0xff]
                  %430 = vst [vmem:[%s344 + $0x150] sm:$0xff] %v429
                  %v431 = vld [vmem:[%s343 + $0x16d8] sm:$0xff]
                  %432 = vst [vmem:[%s344 + $0x158] sm:$0xff] %v431
                  %v433 = vld [vmem:[%s343 + $0x1760] sm:$0xff]
                  %434 = vst [vmem:[%s344 + $0x160] sm:$0xff] %v433
                  %v435 = vld [vmem:[%s343 + $0x17e8] sm:$0xff]
                  %436 = vst [vmem:[%s344 + $0x168] sm:$0xff] %v435
                  %v437 = vld [vmem:[%s343 + $0x1870] sm:$0xff]
                  %438 = vst [vmem:[%s344 + $0x170] sm:$0xff] %v437
                  %v439 = vld [vmem:[%s343 + $0x18f8] sm:$0xff]
                  %440 = vst [vmem:[%s344 + $0x178] sm:$0xff] %v439
                  %v441 = vld [vmem:[%s343 + $0x1980] sm:$0xff]
                  %442 = vst [vmem:[%s344 + $0x180] sm:$0xff] %v441
                  %v443 = vld [vmem:[%s343 + $0x1a08] sm:$0xff]
                  %444 = vst [vmem:[%s344 + $0x188] sm:$0xff] %v443
                  %v445 = vld [vmem:[%s343 + $0x1a90] sm:$0xff]
                  %446 = vst [vmem:[%s344 + $0x190] sm:$0xff] %v445
                  %v447 = vld [vmem:[%s343 + $0x1b18] sm:$0xff]
                  %448 = vst [vmem:[%s344 + $0x198] sm:$0xff] %v447
                  %v449 = vld [vmem:[%s343 + $0x1ba0] sm:$0xff]
                  %450 = vst [vmem:[%s344 + $0x1a0] sm:$0xff] %v449
                  %v451 = vld [vmem:[%s343 + $0x1c28] sm:$0xff]
                  %452 = vst [vmem:[%s344 + $0x1a8] sm:$0xff] %v451
                  %v453 = vld [vmem:[%s343 + $0x1cb0] sm:$0xff]
                  %454 = vst [vmem:[%s344 + $0x1b0] sm:$0xff] %v453
                  %v455 = vld [vmem:[%s343 + $0x1d38] sm:$0xff]
                  %456 = vst [vmem:[%s344 + $0x1b8] sm:$0xff] %v455
                  %v457 = vld [vmem:[%s343 + $0x1dc0] sm:$0xff]
                  %458 = vst [vmem:[%s344 + $0x1c0] sm:$0xff] %v457
                  %v459 = vld [vmem:[%s343 + $0x1e48] sm:$0xff]
                  %460 = vst [vmem:[%s344 + $0x1c8] sm:$0xff] %v459
                  %v461 = vld [vmem:[%s343 + $0x1ed0] sm:$0xff]
                  %462 = vst [vmem:[%s344 + $0x1d0] sm:$0xff] %v461
                  %v463 = vld [vmem:[%s343 + $0x1f58] sm:$0xff]
                  %464 = vst [vmem:[%s344 + $0x1d8] sm:$0xff] %v463
                  %v465 = vld [vmem:[%s343 + $0x1fe0] sm:$0xff]
                  %466 = vst [vmem:[%s344 + $0x1e0] sm:$0xff] %v465
                  %v467 = vld [vmem:[%s343 + $0x2068] sm:$0xff]
                  %468 = vst [vmem:[%s344 + $0x1e8] sm:$0xff] %v467
                  %v469 = vld [vmem:[%s343 + $0x20f0] sm:$0xff]
                  %470 = vst [vmem:[%s344 + $0x1f0] sm:$0xff] %v469
                  %v471 = vld [vmem:[%s343 + $0x2178] sm:$0xff]
                  %472 = vst [vmem:[%s344 + $0x1f8] sm:$0xff] %v471
                $region56: #{band_projection.1} parent=50 // loop_footer
                  %s342 = sadd.s32 1, %s338
                $region57: #{band_projection.1} parent=50 // loop_footer_branch
                  %337 = sbr.rel target = $region53
                $region58: #{band_projection.1} parent=50 // loop_exit
                  _
              $region51: #{band_projection.1} parent=35 // pred_fallthru
                _
              // Predicated region
              $region59: #{band_projection.1} parent=35 // pred_check
                _
              $region60: #{band_projection.1} parent=35 // pred_check_branch
                %474 = sbr.rel target = $region62
              $region61: #{band_projection.1} parent=35 // pred_region
                _
              $region62: #{band_projection.1} parent=35 // pred_fallthru
                _
            $region36: #{band_projection.1} parent=31 // pred_fallthru
              _
            // Predicated region
            $region37: #{band_projection.1} parent=31 // pred_check
              _
            $region38: #{band_projection.1} parent=31 // pred_check_branch
              %197 = sbr.rel target = $region40
            $region39: #{band_projection.1} parent=31 // pred_region
              loop: start=0, step=1, limit=1
              $region41: #{band_projection.1} parent=39 // loop_pre_header
                _
              $region42: #{band_projection.1} parent=39 // loop_header
                %s200 = sphi 0, %s204
                %p201 = scmp.ge.s32.totalorder %s200, 1
                %s205 = sphi %s191, %s191
                %s206 = sphi %s186, %s186
              $region43: #{band_projection.1} parent=39 // loop_header_branch
                %203 = sbr.rel (%p201) target = $region47
              $region44: #{band_projection.1} parent=39 // loop_body
                %v207 = vld [vmem:[%s205] sm:$0xff]
                %208 = vst [vmem:[%s206] sm:$0xff] %v207
                %v209 = vld [vmem:[%s205 + $0x88] sm:$0xff]
                %210 = vst [vmem:[%s206 + $0x8] sm:$0xff] %v209
                %v211 = vld [vmem:[%s205 + $0x110] sm:$0xff]
                %212 = vst [vmem:[%s206 + $0x10] sm:$0xff] %v211
                %v213 = vld [vmem:[%s205 + $0x198] sm:$0xff]
                %214 = vst [vmem:[%s206 + $0x18] sm:$0xff] %v213
                %v215 = vld [vmem:[%s205 + $0x220] sm:$0xff]
                %216 = vst [vmem:[%s206 + $0x20] sm:$0xff] %v215
                %v217 = vld [vmem:[%s205 + $0x2a8] sm:$0xff]
                %218 = vst [vmem:[%s206 + $0x28] sm:$0xff] %v217
                %v219 = vld [vmem:[%s205 + $0x330] sm:$0xff]
                %220 = vst [vmem:[%s206 + $0x30] sm:$0xff] %v219
                %v221 = vld [vmem:[%s205 + $0x3b8] sm:$0xff]
                %222 = vst [vmem:[%s206 + $0x38] sm:$0xff] %v221
                %v223 = vld [vmem:[%s205 + $0x440] sm:$0xff]
                %224 = vst [vmem:[%s206 + $0x40] sm:$0xff] %v223
                %v225 = vld [vmem:[%s205 + $0x4c8] sm:$0xff]
                %226 = vst [vmem:[%s206 + $0x48] sm:$0xff] %v225
                %v227 = vld [vmem:[%s205 + $0x550] sm:$0xff]
                %228 = vst [vmem:[%s206 + $0x50] sm:$0xff] %v227
                %v229 = vld [vmem:[%s205 + $0x5d8] sm:$0xff]
                %230 = vst [vmem:[%s206 + $0x58] sm:$0xff] %v229
                %v231 = vld [vmem:[%s205 + $0x660] sm:$0xff]
                %232 = vst [vmem:[%s206 + $0x60] sm:$0xff] %v231
                %v233 = vld [vmem:[%s205 + $0x6e8] sm:$0xff]
                %234 = vst [vmem:[%s206 + $0x68] sm:$0xff] %v233
                %v235 = vld [vmem:[%s205 + $0x770] sm:$0xff]
                %236 = vst [vmem:[%s206 + $0x70] sm:$0xff] %v235
                %v237 = vld [vmem:[%s205 + $0x7f8] sm:$0xff]
                %238 = vst [vmem:[%s206 + $0x78] sm:$0xff] %v237
                %v239 = vld [vmem:[%s205 + $0x880] sm:$0xff]
                %240 = vst [vmem:[%s206 + $0x80] sm:$0xff] %v239
                %v241 = vld [vmem:[%s205 + $0x908] sm:$0xff]
                %242 = vst [vmem:[%s206 + $0x88] sm:$0xff] %v241
                %v243 = vld [vmem:[%s205 + $0x990] sm:$0xff]
                %244 = vst [vmem:[%s206 + $0x90] sm:$0xff] %v243
                %v245 = vld [vmem:[%s205 + $0xa18] sm:$0xff]
                %246 = vst [vmem:[%s206 + $0x98] sm:$0xff] %v245
                %v247 = vld [vmem:[%s205 + $0xaa0] sm:$0xff]
                %248 = vst [vmem:[%s206 + $0xa0] sm:$0xff] %v247
                %v249 = vld [vmem:[%s205 + $0xb28] sm:$0xff]
                %250 = vst [vmem:[%s206 + $0xa8] sm:$0xff] %v249
                %v251 = vld [vmem:[%s205 + $0xbb0] sm:$0xff]
                %252 = vst [vmem:[%s206 + $0xb0] sm:$0xff] %v251
                %v253 = vld [vmem:[%s205 + $0xc38] sm:$0xff]
                %254 = vst [vmem:[%s206 + $0xb8] sm:$0xff] %v253
                %v255 = vld [vmem:[%s205 + $0xcc0] sm:$0xff]
                %256 = vst [vmem:[%s206 + $0xc0] sm:$0xff] %v255
                %v257 = vld [vmem:[%s205 + $0xd48] sm:$0xff]
                %258 = vst [vmem:[%s206 + $0xc8] sm:$0xff] %v257
                %v259 = vld [vmem:[%s205 + $0xdd0] sm:$0xff]
                %260 = vst [vmem:[%s206 + $0xd0] sm:$0xff] %v259
                %v261 = vld [vmem:[%s205 + $0xe58] sm:$0xff]
                %262 = vst [vmem:[%s206 + $0xd8] sm:$0xff] %v261
                %v263 = vld [vmem:[%s205 + $0xee0] sm:$0xff]
                %264 = vst [vmem:[%s206 + $0xe0] sm:$0xff] %v263
                %v265 = vld [vmem:[%s205 + $0xf68] sm:$0xff]
                %266 = vst [vmem:[%s206 + $0xe8] sm:$0xff] %v265
                %v267 = vld [vmem:[%s205 + $0xff0] sm:$0xff]
                %268 = vst [vmem:[%s206 + $0xf0] sm:$0xff] %v267
                %v269 = vld [vmem:[%s205 + $0x1078] sm:$0xff]
                %270 = vst [vmem:[%s206 + $0xf8] sm:$0xff] %v269
                %v271 = vld [vmem:[%s205 + $0x1100] sm:$0xff]
                %272 = vst [vmem:[%s206 + $0x100] sm:$0xff] %v271
                %v273 = vld [vmem:[%s205 + $0x1188] sm:$0xff]
                %274 = vst [vmem:[%s206 + $0x108] sm:$0xff] %v273
                %v275 = vld [vmem:[%s205 + $0x1210] sm:$0xff]
                %276 = vst [vmem:[%s206 + $0x110] sm:$0xff] %v275
                %v277 = vld [vmem:[%s205 + $0x1298] sm:$0xff]
                %278 = vst [vmem:[%s206 + $0x118] sm:$0xff] %v277
                %v279 = vld [vmem:[%s205 + $0x1320] sm:$0xff]
                %280 = vst [vmem:[%s206 + $0x120] sm:$0xff] %v279
                %v281 = vld [vmem:[%s205 + $0x13a8] sm:$0xff]
                %282 = vst [vmem:[%s206 + $0x128] sm:$0xff] %v281
                %v283 = vld [vmem:[%s205 + $0x1430] sm:$0xff]
                %284 = vst [vmem:[%s206 + $0x130] sm:$0xff] %v283
                %v285 = vld [vmem:[%s205 + $0x14b8] sm:$0xff]
                %286 = vst [vmem:[%s206 + $0x138] sm:$0xff] %v285
                %v287 = vld [vmem:[%s205 + $0x1540] sm:$0xff]
                %288 = vst [vmem:[%s206 + $0x140] sm:$0xff] %v287
                %v289 = vld [vmem:[%s205 + $0x15c8] sm:$0xff]
                %290 = vst [vmem:[%s206 + $0x148] sm:$0xff] %v289
                %v291 = vld [vmem:[%s205 + $0x1650] sm:$0xff]
                %292 = vst [vmem:[%s206 + $0x150] sm:$0xff] %v291
                %v293 = vld [vmem:[%s205 + $0x16d8] sm:$0xff]
                %294 = vst [vmem:[%s206 + $0x158] sm:$0xff] %v293
                %v295 = vld [vmem:[%s205 + $0x1760] sm:$0xff]
                %296 = vst [vmem:[%s206 + $0x160] sm:$0xff] %v295
                %v297 = vld [vmem:[%s205 + $0x17e8] sm:$0xff]
                %298 = vst [vmem:[%s206 + $0x168] sm:$0xff] %v297
                %v299 = vld [vmem:[%s205 + $0x1870] sm:$0xff]
                %300 = vst [vmem:[%s206 + $0x170] sm:$0xff] %v299
                %v301 = vld [vmem:[%s205 + $0x18f8] sm:$0xff]
                %302 = vst [vmem:[%s206 + $0x178] sm:$0xff] %v301
                %v303 = vld [vmem:[%s205 + $0x1980] sm:$0xff]
                %304 = vst [vmem:[%s206 + $0x180] sm:$0xff] %v303
                %v305 = vld [vmem:[%s205 + $0x1a08] sm:$0xff]
                %306 = vst [vmem:[%s206 + $0x188] sm:$0xff] %v305
                %v307 = vld [vmem:[%s205 + $0x1a90] sm:$0xff]
                %308 = vst [vmem:[%s206 + $0x190] sm:$0xff] %v307
                %v309 = vld [vmem:[%s205 + $0x1b18] sm:$0xff]
                %310 = vst [vmem:[%s206 + $0x198] sm:$0xff] %v309
                %v311 = vld [vmem:[%s205 + $0x1ba0] sm:$0xff]
                %312 = vst [vmem:[%s206 + $0x1a0] sm:$0xff] %v311
                %v313 = vld [vmem:[%s205 + $0x1c28] sm:$0xff]
                %314 = vst [vmem:[%s206 + $0x1a8] sm:$0xff] %v313
                %v315 = vld [vmem:[%s205 + $0x1cb0] sm:$0xff]
                %316 = vst [vmem:[%s206 + $0x1b0] sm:$0xff] %v315
                %v317 = vld [vmem:[%s205 + $0x1d38] sm:$0xff]
                %318 = vst [vmem:[%s206 + $0x1b8] sm:$0xff] %v317
                %v319 = vld [vmem:[%s205 + $0x1dc0] sm:$0xff]
                %320 = vst [vmem:[%s206 + $0x1c0] sm:$0xff] %v319
                %v321 = vld [vmem:[%s205 + $0x1e48] sm:$0xff]
                %322 = vst [vmem:[%s206 + $0x1c8] sm:$0xff] %v321
                %v323 = vld [vmem:[%s205 + $0x1ed0] sm:$0xff]
                %324 = vst [vmem:[%s206 + $0x1d0] sm:$0xff] %v323
                %v325 = vld [vmem:[%s205 + $0x1f58] sm:$0xff]
                %326 = vst [vmem:[%s206 + $0x1d8] sm:$0xff] %v325
                %v327 = vld [vmem:[%s205 + $0x1fe0] sm:$0xff]
                %328 = vst [vmem:[%s206 + $0x1e0] sm:$0xff] %v327
                %v329 = vld [vmem:[%s205 + $0x2068] sm:$0xff]
                %330 = vst [vmem:[%s206 + $0x1e8] sm:$0xff] %v329
                %v331 = vld [vmem:[%s205 + $0x20f0] sm:$0xff]
                %332 = vst [vmem:[%s206 + $0x1f0] sm:$0xff] %v331
                %v333 = vld [vmem:[%s205 + $0x2178] sm:$0xff]
                %334 = vst [vmem:[%s206 + $0x1f8] sm:$0xff] %v333
              $region45: #{band_projection.1} parent=39 // loop_footer
                %s204 = sadd.s32 1, %s200
              $region46: #{band_projection.1} parent=39 // loop_footer_branch
                %199 = sbr.rel target = $region42
              $region47: #{band_projection.1} parent=39 // loop_exit
                _
            $region40: #{band_projection.1} parent=31 // pred_fallthru
              _
          $region32: #{band_projection.1} parent=27 // pred_fallthru
            _
          %475 = vnop
        $region28: #{band_projection.1} parent=23 // pred_fallthru
          _
        // Predicated region
        $region63: #{band_projection.1} parent=23 // pred_check
          %p476 = pneg %p100
        $region64: #{band_projection.1} parent=23 // pred_check_branch
          %478 = sbr.rel (%p476) target = $region66
        $region65: #{band_projection.1} parent=23 // pred_region
          %p479 = scmp.lt.s32.totalorder %s19, 16
          %s480 = scalar_select %p479, %s19, 16
          %s481 = smul.addr %s480, 10
          %s482 = smul.addr %s481, 8
          %s483 = scalar_lea.vmem %s2, %s482
        $region66: #{band_projection.1} parent=23 // pred_fallthru
          _
      $region24: #{band_projection.1} parent=5 // pred_fallthru
        _
      %p484 = scmp.le.s32.totalorder 1, %s10
      %p485 = scmp.lt.s32.totalorder %s10, 35
      %p486 = pnand %p484, %p485
      %p487 = pneg %p486
      // Predicated region
      $region67: #{band_projection.1} parent=5 // pred_check
        _
      $region68: #{band_projection.1} parent=5 // pred_check_branch
        %489 = sbr.rel (%p486) target = $region70
      $region69: #{band_projection.1} parent=5 // pred_region
        %s490 = ssub.s32 %s10, 1
        %s491 = sand.u32 %s46, 1
        %s492 = sand.u32 %s46, 1
        %s493 = smul.addr %s492, 512
        %s494 = scalar_lea.vmem [#allocation3], %s493
        // Predicated region
        $region71: #{band_projection.1} parent=69 // pred_check
          %p495 = pneg %p59
        $region72: #{band_projection.1} parent=69 // pred_check_branch
          %497 = sbr.rel (%p495) target = $region74
        $region73: #{band_projection.1} parent=69 // pred_region
          _
        $region74: #{band_projection.1} parent=69 // pred_fallthru
          _
        %s498 = sand.u32 %s46, 1
        %s499 = sand.u32 %s46, 1
        %s500 = smul.addr %s499, 512
        %s501 = scalar_lea.vmem [#allocation3], %s500
        %p502 = pneg %p59
        %p503 = pneg %p56
        %p504 = pneg %p80
        %p505 = pneg %p77
        %p506 = scmp.lt.s32.totalorder %s22, 16
        %s507 = scalar_select %p506, %s22, 16
        %s508 = smul.addr %s507, 10
        %s509 = smul.addr %s508, 8
        %s510 = scalar_lea.vmem %s2, %s509
        %p511 = pneg %p106
        %p512 = pneg %p103
        %p513 = pneg %p127
        %p514 = pneg %p124
        %p515 = pneg %p155
        %p516 = pneg %p152
        %s517 = smul.u32 16, %s21
        %p518 = scmp.lt.s32.totalorder %s20, 1
        %s519 = scalar_select %p518, %s20, 1
        %p520 = scmp.lt.s32.totalorder %s517, 15
        %s521 = scalar_select %p520, %s517, 15
        %s522 = smul.addr %s521, 5
        %s523 = smul.addr %s519, 80
        %s524 = sadd.s32 %s522, %s523
        %s525 = smul.addr %s524, 8
        %s526 = scalar_lea.vmem %s4, %s525
        %s527 = sadd.s32 %s22, %s21
        %p528 = scmp.lt.s32.totalorder %s22, 16
        %s529 = scalar_select %p528, %s22, 16
        %s530 = smul.addr %s529, 10
        %s531 = smul.addr %s530, 8
        %s532 = scalar_lea.vmem %s2, %s531
        %s533 = smul.u32 16, %s21
        %p534 = scmp.lt.s32.totalorder %s20, 1
        %s535 = scalar_select %p534, %s20, 1
        %p536 = scmp.lt.s32.totalorder %s533, 15
        %s537 = scalar_select %p536, %s533, 15
        %s538 = smul.addr %s537, 5
        %s539 = smul.addr %s535, 80
        %s540 = sadd.s32 %s538, %s539
        %s541 = smul.addr %s540, 8
        %s542 = scalar_lea.vmem %s4, %s541
        %s543 = smul.u32 16, %s21
        %p544 = scmp.eq.s32.totalorder %s22, 0
        // Predicated region
        $region75: #{band_projection.1} parent=69 // pred_check
          %p545 = pneg %p544
        $region76: #{band_projection.1} parent=69 // pred_check_branch
          %547 = sbr.rel (%p545) target = $region78
        $region77: #{band_projection.1} parent=69 // pred_region
          %548 = vst [vmem:[#allocation2] sm:$0xff] 0.0
          %549 = vst [vmem:[#allocation2 + $0x8] sm:$0xff] 0.0
          %550 = vst [vmem:[#allocation2 + $0x10] sm:$0xff] 0.0
          %551 = vst [vmem:[#allocation2 + $0x18] sm:$0xff] 0.0
          %vm552 = vcmask 7168
          %553 = vst.msk [vmem:[#allocation2 + $0x20] sm:$0xff] %vm552, 0.0
          %554 = vst [vmem:[#allocation2 + $0x28] sm:$0xff] 0.0
          %555 = vst [vmem:[#allocation2 + $0x30] sm:$0xff] 0.0
          %556 = vst [vmem:[#allocation2 + $0x38] sm:$0xff] 0.0
          %557 = vst [vmem:[#allocation2 + $0x40] sm:$0xff] 0.0
          %558 = vst.msk [vmem:[#allocation2 + $0x48] sm:$0xff] %vm552, 0.0
          %559 = vst [vmem:[#allocation2 + $0x50] sm:$0xff] 0.0
          %560 = vst [vmem:[#allocation2 + $0x58] sm:$0xff] 0.0
          %561 = vst [vmem:[#allocation2 + $0x60] sm:$0xff] 0.0
          %562 = vst [vmem:[#allocation2 + $0x68] sm:$0xff] 0.0
          %563 = vst.msk [vmem:[#allocation2 + $0x70] sm:$0xff] %vm552, 0.0
          %564 = vst [vmem:[#allocation2 + $0x78] sm:$0xff] 0.0
          %565 = vst [vmem:[#allocation2 + $0x80] sm:$0xff] 0.0
          %566 = vst [vmem:[#allocation2 + $0x88] sm:$0xff] 0.0
          %567 = vst [vmem:[#allocation2 + $0x90] sm:$0xff] 0.0
          %568 = vst.msk [vmem:[#allocation2 + $0x98] sm:$0xff] %vm552, 0.0
          %569 = vst [vmem:[#allocation2 + $0xa0] sm:$0xff] 0.0
          %570 = vst [vmem:[#allocation2 + $0xa8] sm:$0xff] 0.0
          %571 = vst [vmem:[#allocation2 + $0xb0] sm:$0xff] 0.0
          %572 = vst [vmem:[#allocation2 + $0xb8] sm:$0xff] 0.0
          %573 = vst.msk [vmem:[#allocation2 + $0xc0] sm:$0xff] %vm552, 0.0
          %574 = vst [vmem:[#allocation2 + $0xc8] sm:$0xff] 0.0
          %575 = vst [vmem:[#allocation2 + $0xd0] sm:$0xff] 0.0
          %576 = vst [vmem:[#allocation2 + $0xd8] sm:$0xff] 0.0
          %577 = vst [vmem:[#allocation2 + $0xe0] sm:$0xff] 0.0
          %578 = vst.msk [vmem:[#allocation2 + $0xe8] sm:$0xff] %vm552, 0.0
          %579 = vst [vmem:[#allocation2 + $0xf0] sm:$0xff] 0.0
          %580 = vst [vmem:[#allocation2 + $0xf8] sm:$0xff] 0.0
          %581 = vst [vmem:[#allocation2 + $0x100] sm:$0xff] 0.0
          %582 = vst [vmem:[#allocation2 + $0x108] sm:$0xff] 0.0
          %583 = vst.msk [vmem:[#allocation2 + $0x110] sm:$0xff] %vm552, 0.0
          %584 = vst [vmem:[#allocation2 + $0x118] sm:$0xff] 0.0
          %585 = vst [vmem:[#allocation2 + $0x120] sm:$0xff] 0.0
          %586 = vst [vmem:[#allocation2 + $0x128] sm:$0xff] 0.0
          %587 = vst [vmem:[#allocation2 + $0x130] sm:$0xff] 0.0
          %588 = vst.msk [vmem:[#allocation2 + $0x138] sm:$0xff] %vm552, 0.0
          %589 = vst [vmem:[#allocation2 + $0x140] sm:$0xff] 0.0
          %590 = vst [vmem:[#allocation2 + $0x148] sm:$0xff] 0.0
          %591 = vst [vmem:[#allocation2 + $0x150] sm:$0xff] 0.0
          %592 = vst [vmem:[#allocation2 + $0x158] sm:$0xff] 0.0
          %593 = vst.msk [vmem:[#allocation2 + $0x160] sm:$0xff] %vm552, 0.0
          %594 = vst [vmem:[#allocation2 + $0x168] sm:$0xff] 0.0
          %595 = vst [vmem:[#allocation2 + $0x170] sm:$0xff] 0.0
          %596 = vst [vmem:[#allocation2 + $0x178] sm:$0xff] 0.0
          %597 = vst [vmem:[#allocation2 + $0x180] sm:$0xff] 0.0
          %598 = vst.msk [vmem:[#allocation2 + $0x188] sm:$0xff] %vm552, 0.0
          %599 = vst [vmem:[#allocation2 + $0x190] sm:$0xff] 0.0
          %600 = vst [vmem:[#allocation2 + $0x198] sm:$0xff] 0.0
          %601 = vst [vmem:[#allocation2 + $0x1a0] sm:$0xff] 0.0
          %602 = vst [vmem:[#allocation2 + $0x1a8] sm:$0xff] 0.0
          %603 = vst.msk [vmem:[#allocation2 + $0x1b0] sm:$0xff] %vm552, 0.0
          %604 = vst [vmem:[#allocation2 + $0x1b8] sm:$0xff] 0.0
          %605 = vst [vmem:[#allocation2 + $0x1c0] sm:$0xff] 0.0
          %606 = vst [vmem:[#allocation2 + $0x1c8] sm:$0xff] 0.0
          %607 = vst [vmem:[#allocation2 + $0x1d0] sm:$0xff] 0.0
          %608 = vst.msk [vmem:[#allocation2 + $0x1d8] sm:$0xff] %vm552, 0.0
          %609 = vst [vmem:[#allocation2 + $0x1e0] sm:$0xff] 0.0
          %610 = vst [vmem:[#allocation2 + $0x1e8] sm:$0xff] 0.0
          %611 = vst [vmem:[#allocation2 + $0x1f0] sm:$0xff] 0.0
          %612 = vst [vmem:[#allocation2 + $0x1f8] sm:$0xff] 0.0
          %613 = vst.msk [vmem:[#allocation2 + $0x200] sm:$0xff] %vm552, 0.0
          %614 = vst [vmem:[#allocation2 + $0x208] sm:$0xff] 0.0
          %615 = vst [vmem:[#allocation2 + $0x210] sm:$0xff] 0.0
          %616 = vst [vmem:[#allocation2 + $0x218] sm:$0xff] 0.0
          %617 = vst [vmem:[#allocation2 + $0x220] sm:$0xff] 0.0
          %618 = vst.msk [vmem:[#allocation2 + $0x228] sm:$0xff] %vm552, 0.0
          %619 = vst [vmem:[#allocation2 + $0x230] sm:$0xff] 0.0
          %620 = vst [vmem:[#allocation2 + $0x238] sm:$0xff] 0.0
          %621 = vst [vmem:[#allocation2 + $0x240] sm:$0xff] 0.0
          %622 = vst [vmem:[#allocation2 + $0x248] sm:$0xff] 0.0
          %623 = vst.msk [vmem:[#allocation2 + $0x250] sm:$0xff] %vm552, 0.0
          %624 = vst [vmem:[#allocation2 + $0x258] sm:$0xff] 0.0
          %625 = vst [vmem:[#allocation2 + $0x260] sm:$0xff] 0.0
          %626 = vst [vmem:[#allocation2 + $0x268] sm:$0xff] 0.0
          %627 = vst [vmem:[#allocation2 + $0x270] sm:$0xff] 0.0
          %628 = vst.msk [vmem:[#allocation2 + $0x278] sm:$0xff] %vm552, 0.0
        $region78: #{band_projection.1} parent=69 // pred_fallthru
          _
        %v629 = vld [vmem:[%s494] sm:$0xff]
        %v630 = vld [vmem:[%s494 + $0x8] sm:$0xff]
        %v631 = vld [vmem:[%s494 + $0x10] sm:$0xff]
        %v632 = vld [vmem:[%s494 + $0x18] sm:$0xff]
        %v633 = vld [vmem:[%s494 + $0x20] sm:$0xff]
        %v634 = vld [vmem:[%s494 + $0x28] sm:$0xff]
        %v635 = vld [vmem:[%s494 + $0x30] sm:$0xff]
        %v636 = vld [vmem:[%s494 + $0x38] sm:$0xff]
        %v637 = vld [vmem:[%s494 + $0x40] sm:$0xff]
        %v638 = vld [vmem:[%s494 + $0x48] sm:$0xff]
        %v639 = vld [vmem:[%s494 + $0x50] sm:$0xff]
        %v640 = vld [vmem:[%s494 + $0x58] sm:$0xff]
        %v641 = vld [vmem:[%s494 + $0x60] sm:$0xff]
        %v642 = vld [vmem:[%s494 + $0x68] sm:$0xff]
        %v643 = vld [vmem:[%s494 + $0x70] sm:$0xff]
        %v644 = vld [vmem:[%s494 + $0x78] sm:$0xff]
        %v645 = vld [vmem:[%s494 + $0x80] sm:$0xff]
        %v646 = vld [vmem:[%s494 + $0x88] sm:$0xff]
        %v647 = vld [vmem:[%s494 + $0x90] sm:$0xff]
        %v648 = vld [vmem:[%s494 + $0x98] sm:$0xff]
        %v649 = vld [vmem:[%s494 + $0xa0] sm:$0xff]
        %v650 = vld [vmem:[%s494 + $0xa8] sm:$0xff]
        %v651 = vld [vmem:[%s494 + $0xb0] sm:$0xff]
        %v652 = vld [vmem:[%s494 + $0xb8] sm:$0xff]
        %v653 = vld [vmem:[%s494 + $0xc0] sm:$0xff]
        %v654 = vld [vmem:[%s494 + $0xc8] sm:$0xff]
        %v655 = vld [vmem:[%s494 + $0xd0] sm:$0xff]
        %v656 = vld [vmem:[%s494 + $0xd8] sm:$0xff]
        %v657 = vld [vmem:[%s494 + $0xe0] sm:$0xff]
        %v658 = vld [vmem:[%s494 + $0xe8] sm:$0xff]
        %v659 = vld [vmem:[%s494 + $0xf0] sm:$0xff]
        %v660 = vld [vmem:[%s494 + $0xf8] sm:$0xff]
        %v661 = vld [vmem:[%s494 + $0x100] sm:$0xff]
        %v662 = vld [vmem:[%s494 + $0x108] sm:$0xff]
        %v663 = vld [vmem:[%s494 + $0x110] sm:$0xff]
        %v664 = vld [vmem:[%s494 + $0x118] sm:$0xff]
        %v665 = vld [vmem:[%s494 + $0x120] sm:$0xff]
        %v666 = vld [vmem:[%s494 + $0x128] sm:$0xff]
        %v667 = vld [vmem:[%s494 + $0x130] sm:$0xff]
        %v668 = vld [vmem:[%s494 + $0x138] sm:$0xff]
        %v669 = vld [vmem:[%s494 + $0x140] sm:$0xff]
        %v670 = vld [vmem:[%s494 + $0x148] sm:$0xff]
        %v671 = vld [vmem:[%s494 + $0x150] sm:$0xff]
        %v672 = vld [vmem:[%s494 + $0x158] sm:$0xff]
        %v673 = vld [vmem:[%s494 + $0x160] sm:$0xff]
        %v674 = vld [vmem:[%s494 + $0x168] sm:$0xff]
        %v675 = vld [vmem:[%s494 + $0x170] sm:$0xff]
        %v676 = vld [vmem:[%s494 + $0x178] sm:$0xff]
        %v677 = vld [vmem:[%s494 + $0x180] sm:$0xff]
        %v678 = vld [vmem:[%s494 + $0x188] sm:$0xff]
        %v679 = vld [vmem:[%s494 + $0x190] sm:$0xff]
        %v680 = vld [vmem:[%s494 + $0x198] sm:$0xff]
        %v681 = vld [vmem:[%s494 + $0x1a0] sm:$0xff]
        %v682 = vld [vmem:[%s494 + $0x1a8] sm:$0xff]
        %v683 = vld [vmem:[%s494 + $0x1b0] sm:$0xff]
        %v684 = vld [vmem:[%s494 + $0x1b8] sm:$0xff]
        %v685 = vld [vmem:[%s494 + $0x1c0] sm:$0xff]
        %v686 = vld [vmem:[%s494 + $0x1c8] sm:$0xff]
        %v687 = vld [vmem:[%s494 + $0x1d0] sm:$0xff]
        %v688 = vld [vmem:[%s494 + $0x1d8] sm:$0xff]
        %v689 = vld [vmem:[%s494 + $0x1e0] sm:$0xff]
        %v690 = vld [vmem:[%s494 + $0x1e8] sm:$0xff]
        %v691 = vld [vmem:[%s494 + $0x1f0] sm:$0xff]
        %v692 = vld [vmem:[%s494 + $0x1f8] sm:$0xff]
        %v693 = vld [vmem:[%s1] sm:$0xff]
        %v694 = vld [vmem:[%s1 + $0x8] sm:$0xff]
        %v695 = vld [vmem:[%s1 + $0x10] sm:$0xff]
        %v696 = vld [vmem:[%s1 + $0x18] sm:$0xff]
        %v697 = vld [vmem:[%s1 + $0x20] sm:$0xff]
        %v698 = vld [vmem:[%s1 + $0x28] sm:$0xff]
        %v699 = vld [vmem:[%s1 + $0x30] sm:$0xff]
        %v700 = vld [vmem:[%s1 + $0x38] sm:$0xff]
        %701 = vmatprep.subr.mxu0 0.0
        %702 = vmatpush1.msra.mxu0 %v629
        %703 = vmatprep.subr.mxu0 0.0
        %704 = vmatpush1.msra.mxu0 %v630
        %705 = vmatprep.subr.mxu0 0.0
        %706 = vmatpush1.msra.mxu0 %v631
        %707 = vmatprep.subr.mxu0 0.0
        %708 = vmatpush1.msra.mxu0 %v632
        %709 = vmatprep.subr.mxu0 0.0
        %710 = vmatpush1.msra.mxu0 %v633
        %711 = vmatprep.subr.mxu0 0.0
        %712 = vmatpush1.msra.mxu0 %v634
        %713 = vmatprep.subr.mxu0 0.0
        %714 = vmatpush1.msra.mxu0 %v635
        %715 = vmatprep.subr.mxu0 0.0
        %716 = vmatpush1.msra.mxu0 %v636
        %717 = vmatprep.subr.mxu0 0.0
        %718 = vmatpush1.msra.mxu0 %v637
        %719 = vmatprep.subr.mxu0 0.0
        %720 = vmatpush1.msra.mxu0 %v638
        %721 = vmatprep.subr.mxu0 0.0
        %722 = vmatpush1.msra.mxu0 %v639
        %723 = vmatprep.subr.mxu0 0.0
        %724 = vmatpush1.msra.mxu0 %v640
        %725 = vmatprep.subr.mxu0 0.0
        %726 = vmatpush1.msra.mxu0 %v641
        %727 = vmatprep.subr.mxu0 0.0
        %728 = vmatpush1.msra.mxu0 %v642
        %729 = vmatprep.subr.mxu0 0.0
        %730 = vmatpush1.msra.mxu0 %v643
        %731 = vmatprep.subr.mxu0 0.0
        %732 = vmatpush1.msra.mxu0 %v644
        %733 = vmatprep.subr.mxu0 0.0
        %734 = vmatpush1.msra.mxu0 %v645
        %735 = vmatprep.subr.mxu0 0.0
        %736 = vmatpush1.msra.mxu0 %v646
        %737 = vmatprep.subr.mxu0 0.0
        %738 = vmatpush1.msra.mxu0 %v647
        %739 = vmatprep.subr.mxu0 0.0
        %740 = vmatpush1.msra.mxu0 %v648
        %741 = vmatprep.subr.mxu0 0.0
        %742 = vmatpush1.msra.mxu0 %v649
        %743 = vmatprep.subr.mxu0 0.0
        %744 = vmatpush1.msra.mxu0 %v650
        %745 = vmatprep.subr.mxu0 0.0
        %746 = vmatpush1.msra.mxu0 %v651
        %747 = vmatprep.subr.mxu0 0.0
        %748 = vmatpush1.msra.mxu0 %v652
        %749 = vmatprep.subr.mxu0 0.0
        %750 = vmatpush1.msra.mxu0 %v653
        %751 = vmatprep.subr.mxu0 0.0
        %752 = vmatpush1.msra.mxu0 %v654
        %753 = vmatprep.subr.mxu0 0.0
        %754 = vmatpush1.msra.mxu0 %v655
        %755 = vmatprep.subr.mxu0 0.0
        %756 = vmatpush1.msra.mxu0 %v656
        %757 = vmatprep.subr.mxu0 0.0
        %758 = vmatpush1.msra.mxu0 %v657
        %759 = vmatprep.subr.mxu0 0.0
        %760 = vmatpush1.msra.mxu0 %v658
        %761 = vmatprep.subr.mxu0 0.0
        %762 = vmatpush1.msra.mxu0 %v659
        %763 = vmatprep.subr.mxu0 0.0
        %764 = vmatpush1.msra.mxu0 %v660
        %765 = vmatprep.mubr.f32.mxu0 %v694
        %766 = vmatmul.mubr.f32.gmra.mrb[0].mxu0 %v693
        %v767 = vpop.f32.mrb[0].mxu0
        %v768 = vadd.f32 0.0, %v767
        %v769 = vpop.f32.mrb[0].mxu0
        %770 = vmatprep.mubr.f32.mxu0 %v698
        %771 = vmatmul.mubr.f32.gmra.mrb[0].mxu0 %v697
        %v772 = vpop.f32.mrb[0].mxu0
        %v773 = vadd.f32 0.0, %v772
        %v774 = vpop.f32.mrb[0].mxu0
        %775 = vdwg.mxu0
        %776 = vmatprep.subr.mxu0 0.0
        %777 = vmatpush1.msra.mxu0 %v661
        %778 = vmatprep.subr.mxu0 0.0
        %779 = vmatpush1.msra.mxu0 %v662
        %780 = vmatprep.subr.mxu0 0.0
        %781 = vmatpush1.msra.mxu0 %v663
        %782 = vmatprep.subr.mxu0 0.0
        %783 = vmatpush1.msra.mxu0 %v664
        %784 = vmatprep.subr.mxu0 0.0
        %785 = vmatpush1.msra.mxu0 %v665
        %786 = vmatprep.subr.mxu0 0.0
        %787 = vmatpush1.msra.mxu0 %v666
        %788 = vmatprep.subr.mxu0 0.0
        %789 = vmatpush1.msra.mxu0 %v667
        %790 = vmatprep.subr.mxu0 0.0
        %791 = vmatpush1.msra.mxu0 %v668
        %792 = vmatprep.subr.mxu0 0.0
        %793 = vmatpush1.msra.mxu0 %v669
        %794 = vmatprep.subr.mxu0 0.0
        %795 = vmatpush1.msra.mxu0 %v670
        %796 = vmatprep.subr.mxu0 0.0
        %797 = vmatpush1.msra.mxu0 %v671
        %798 = vmatprep.subr.mxu0 0.0
        %799 = vmatpush1.msra.mxu0 %v672
        %800 = vmatprep.subr.mxu0 0.0
        %801 = vmatpush1.msra.mxu0 %v673
        %802 = vmatprep.subr.mxu0 0.0
        %803 = vmatpush1.msra.mxu0 %v674
        %804 = vmatprep.subr.mxu0 0.0
        %805 = vmatpush1.msra.mxu0 %v675
        %806 = vmatprep.subr.mxu0 0.0
        %807 = vmatpush1.msra.mxu0 %v676
        %808 = vmatprep.subr.mxu0 0.0
        %809 = vmatpush1.msra.mxu0 %v677
        %810 = vmatprep.subr.mxu0 0.0
        %811 = vmatpush1.msra.mxu0 %v678
        %812 = vmatprep.subr.mxu0 0.0
        %813 = vmatpush1.msra.mxu0 %v679
        %814 = vmatprep.subr.mxu0 0.0
        %815 = vmatpush1.msra.mxu0 %v680
        %816 = vmatprep.subr.mxu0 0.0
        %817 = vmatpush1.msra.mxu0 %v681
        %818 = vmatprep.subr.mxu0 0.0
        %819 = vmatpush1.msra.mxu0 %v682
        %820 = vmatprep.subr.mxu0 0.0
        %821 = vmatpush1.msra.mxu0 %v683
        %822 = vmatprep.subr.mxu0 0.0
        %823 = vmatpush1.msra.mxu0 %v684
        %824 = vmatprep.subr.mxu0 0.0
        %825 = vmatpush1.msra.mxu0 %v685
        %826 = vmatprep.subr.mxu0 0.0
        %827 = vmatpush1.msra.mxu0 %v686
        %828 = vmatprep.subr.mxu0 0.0
        %829 = vmatpush1.msra.mxu0 %v687
        %830 = vmatprep.subr.mxu0 0.0
        %831 = vmatpush1.msra.mxu0 %v688
        %832 = vmatprep.subr.mxu0 0.0
        %833 = vmatpush1.msra.mxu0 %v689
        %834 = vmatprep.subr.mxu0 0.0
        %835 = vmatpush1.msra.mxu0 %v690
        %836 = vmatprep.subr.mxu0 0.0
        %837 = vmatpush1.msra.mxu0 %v691
        %838 = vmatprep.subr.mxu0 0.0
        %839 = vmatpush1.msra.mxu0 %v692
        %840 = vmatprep.mubr.f32.mxu0 %v696
        %841 = vmatmul.mubr.f32.gmra.mrb[0].mxu0 %v695
        %v842 = vpop.f32.mrb[0].mxu0
        %v843 = vadd.f32 %v768, %v842
        %v844 = vpop.f32.mrb[0].mxu0
        %845 = vmatprep.mubr.f32.mxu0 %v700
        %846 = vmatmul.mubr.f32.gmra.mrb[0].mxu0 %v699
        %v847 = vpop.f32.mrb[0].mxu0
        %v848 = vadd.f32 %v773, %v847
        %v849 = vpop.f32.mrb[0].mxu0
        %850 = vdwg.mxu0
        %851 = vxpose.xlu0.b32.start [1/16] %v843, 128
        %852 = vxpose.xlu0.b32.cont [2/16] %v848, 128
        %853 = vxpose.xlu0.b32.cont [3/16] 0.0, 128
        %854 = vxpose.xlu0.b32.cont [4/16] 0.0, 128
        %855 = vxpose.xlu0.b32.cont [5/16] 0.0, 128
        %856 = vxpose.xlu0.b32.cont [6/16] 0.0, 128
        %857 = vxpose.xlu0.b32.cont [7/16] 0.0, 128
        %858 = vxpose.xlu0.b32.cont [8/16] 0.0, 128
        %859 = vxpose.xlu0.b32.cont [9/16] 0.0, 128
        %860 = vxpose.xlu0.b32.cont [10/16] 0.0, 128
        %861 = vxpose.xlu0.b32.cont [11/16] 0.0, 128
        %862 = vxpose.xlu0.b32.cont [12/16] 0.0, 128
        %863 = vxpose.xlu0.b32.cont [13/16] 0.0, 128
        %864 = vxpose.xlu0.b32.cont [14/16] 0.0, 128
        %865 = vxpose.xlu0.b32.cont [15/16] 0.0, 128
        %866 = vxpose.xlu0.b32.end [16/16] 0.0, 128
        %v867 = vpop.trf.xlu0
        %v868 = vpop.trf.xlu0
        %v869 = vpop.trf.xlu0
        %v870 = vpop.trf.xlu0
        %v871 = vpop.trf.xlu0
        %v872 = vpop.trf.xlu0
        %v873 = vpop.trf.xlu0
        %v874 = vpop.trf.xlu0
        %v875 = vpop.trf.xlu0
        %v876 = vpop.trf.xlu0
        %v877 = vpop.trf.xlu0
        %v878 = vpop.trf.xlu0
        %v879 = vpop.trf.xlu0
        %v880 = vpop.trf.xlu0
        %v881 = vpop.trf.xlu0
        %v882 = vpop.trf.xlu0
        %v883 = vld [vmem:[%s532] sm:$0xff]
        %v884 = vld [vmem:[%s532 + $0x8] sm:$0xff]
        %v885 = vld [vmem:[%s532 + $0x10] sm:$0xff]
        %v886 = vld [vmem:[%s532 + $0x18] sm:$0xff]
        %v887 = vld [vmem:[%s532 + $0x20] sm:$0xff]
        %v888 = vld [vmem:[%s532 + $0x28] sm:$0xff]
        %v889 = vld [vmem:[%s532 + $0x30] sm:$0xff]
        %v890 = vld [vmem:[%s532 + $0x38] sm:$0xff]
        %v891 = vld [vmem:[%s532 + $0x40] sm:$0xff]
        %v892 = vld [vmem:[%s532 + $0x48] sm:$0xff]
        %v893 = vld [vmem:[#allocation2] sm:$0xff]
        %v894 = vld [vmem:[#allocation2 + $0x8] sm:$0xff]
        %v895 = vld [vmem:[#allocation2 + $0x10] sm:$0xff]
        %v896 = vld [vmem:[#allocation2 + $0x18] sm:$0xff]
        %v897 = vld [vmem:[#allocation2 + $0x20] sm:$0xff]
        %v898 = vld [vmem:[#allocation2 + $0x28] sm:$0xff]
        %v899 = vld [vmem:[#allocation2 + $0x30] sm:$0xff]
        %v900 = vld [vmem:[#allocation2 + $0x38] sm:$0xff]
        %v901 = vld [vmem:[#allocation2 + $0x40] sm:$0xff]
        %v902 = vld [vmem:[#allocation2 + $0x48] sm:$0xff]
        %v903 = vld [vmem:[#allocation2 + $0x50] sm:$0xff]
        %v904 = vld [vmem:[#allocation2 + $0x58] sm:$0xff]
        %v905 = vld [vmem:[#allocation2 + $0x60] sm:$0xff]
        %v906 = vld [vmem:[#allocation2 + $0x68] sm:$0xff]
        %v907 = vld [vmem:[#allocation2 + $0x70] sm:$0xff]
        %v908 = vld [vmem:[#allocation2 + $0x78] sm:$0xff]
        %v909 = vld [vmem:[#allocation2 + $0x80] sm:$0xff]
        %v910 = vld [vmem:[#allocation2 + $0x88] sm:$0xff]
        %v911 = vld [vmem:[#allocation2 + $0x90] sm:$0xff]
        %v912 = vld [vmem:[#allocation2 + $0x98] sm:$0xff]
        %v913 = vld [vmem:[#allocation2 + $0xa0] sm:$0xff]
        %v914 = vld [vmem:[#allocation2 + $0xa8] sm:$0xff]
        %v915 = vld [vmem:[#allocation2 + $0xb0] sm:$0xff]
        %v916 = vld [vmem:[#allocation2 + $0xb8] sm:$0xff]
        %v917 = vld [vmem:[#allocation2 + $0xc0] sm:$0xff]
        %v918 = vld [vmem:[#allocation2 + $0xc8] sm:$0xff]
        %v919 = vld [vmem:[#allocation2 + $0xd0] sm:$0xff]
        %v920 = vld [vmem:[#allocation2 + $0xd8] sm:$0xff]
        %v921 = vld [vmem:[#allocation2 + $0xe0] sm:$0xff]
        %v922 = vld [vmem:[#allocation2 + $0xe8] sm:$0xff]
        %v923 = vld [vmem:[#allocation2 + $0xf0] sm:$0xff]
        %v924 = vld [vmem:[#allocation2 + $0xf8] sm:$0xff]
        %v925 = vld [vmem:[#allocation2 + $0x100] sm:$0xff]
        %v926 = vld [vmem:[#allocation2 + $0x108] sm:$0xff]
        %v927 = vld [vmem:[#allocation2 + $0x110] sm:$0xff]
        %v928 = vld [vmem:[#allocation2 + $0x118] sm:$0xff]
        %v929 = vld [vmem:[#allocation2 + $0x120] sm:$0xff]
        %v930 = vld [vmem:[#allocation2 + $0x128] sm:$0xff]
        %v931 = vld [vmem:[#allocation2 + $0x130] sm:$0xff]
        %v932 = vld [vmem:[#allocation2 + $0x138] sm:$0xff]
        %v933 = vld [vmem:[#allocation2 + $0x140] sm:$0xff]
        %v934 = vld [vmem:[#allocation2 + $0x148] sm:$0xff]
        %v935 = vld [vmem:[#allocation2 + $0x150] sm:$0xff]
        %v936 = vld [vmem:[#allocation2 + $0x158] sm:$0xff]
        %v937 = vld [vmem:[#allocation2 + $0x160] sm:$0xff]
        %v938 = vld [vmem:[#allocation2 + $0x168] sm:$0xff]
        %v939 = vld [vmem:[#allocation2 + $0x170] sm:$0xff]
        %v940 = vld [vmem:[#allocation2 + $0x178] sm:$0xff]
        %v941 = vld [vmem:[#allocation2 + $0x180] sm:$0xff]
        %v942 = vld [vmem:[#allocation2 + $0x188] sm:$0xff]
        %v943 = vld [vmem:[#allocation2 + $0x190] sm:$0xff]
        %v944 = vld [vmem:[#allocation2 + $0x198] sm:$0xff]
        %v945 = vld [vmem:[#allocation2 + $0x1a0] sm:$0xff]
        %v946 = vld [vmem:[#allocation2 + $0x1a8] sm:$0xff]
        %v947 = vld [vmem:[#allocation2 + $0x1b0] sm:$0xff]
        %v948 = vld [vmem:[#allocation2 + $0x1b8] sm:$0xff]
        %v949 = vld [vmem:[#allocation2 + $0x1c0] sm:$0xff]
        %v950 = vld [vmem:[#allocation2 + $0x1c8] sm:$0xff]
        %v951 = vld [vmem:[#allocation2 + $0x1d0] sm:$0xff]
        %v952 = vld [vmem:[#allocation2 + $0x1d8] sm:$0xff]
        %v953 = vld [vmem:[#allocation2 + $0x1e0] sm:$0xff]
        %v954 = vld [vmem:[#allocation2 + $0x1e8] sm:$0xff]
        %v955 = vld [vmem:[#allocation2 + $0x1f0] sm:$0xff]
        %v956 = vld [vmem:[#allocation2 + $0x1f8] sm:$0xff]
        %v957 = vld [vmem:[#allocation2 + $0x200] sm:$0xff]
        %v958 = vld [vmem:[#allocation2 + $0x208] sm:$0xff]
        %v959 = vld [vmem:[#allocation2 + $0x210] sm:$0xff]
        %v960 = vld [vmem:[#allocation2 + $0x218] sm:$0xff]
        %v961 = vld [vmem:[#allocation2 + $0x220] sm:$0xff]
        %v962 = vld [vmem:[#allocation2 + $0x228] sm:$0xff]
        %v963 = vld [vmem:[#allocation2 + $0x230] sm:$0xff]
        %v964 = vld [vmem:[#allocation2 + $0x238] sm:$0xff]
        %v965 = vld [vmem:[#allocation2 + $0x240] sm:$0xff]
        %v966 = vld [vmem:[#allocation2 + $0x248] sm:$0xff]
        %v967 = vld [vmem:[#allocation2 + $0x250] sm:$0xff]
        %v968 = vld [vmem:[#allocation2 + $0x258] sm:$0xff]
        %v969 = vld [vmem:[#allocation2 + $0x260] sm:$0xff]
        %v970 = vld [vmem:[#allocation2 + $0x268] sm:$0xff]
        %v971 = vld [vmem:[#allocation2 + $0x270] sm:$0xff]
        %v972 = vld [vmem:[#allocation2 + $0x278] sm:$0xff]
        %vm973 = vcmask 130048
        %v975 = vsel %vm973, %v867, 0
        %v978 = vsel %vm973, %v868, 0
        %v981 = vsel %vm973, %v869, 0
        %v984 = vsel %vm973, %v870, 0
        %v987 = vsel %vm973, %v871, 0
        %v990 = vsel %vm973, %v872, 0
        %v993 = vsel %vm973, %v873, 0
        %v996 = vsel %vm973, %v874, 0
        %v999 = vsel %vm973, %v875, 0
        %v1002 = vsel %vm973, %v876, 0
        %v1005 = vsel %vm973, %v877, 0
        %v1008 = vsel %vm973, %v878, 0
        %v1011 = vsel %vm973, %v879, 0
        %v1014 = vsel %vm973, %v880, 0
        %v1017 = vsel %vm973, %v881, 0
        %v1020 = vsel %vm973, %v882, 0
        %1022 = vmatprep.subr.mxu0 %v884
        %1023 = vmatpush1.msra.mxu0 %v883
        %1024 = vmatprep.subr.mxu0 %v889
        %1025 = vmatpush1.msra.mxu0 %v888
        %1026 = vmatprep.subr.mxu0 0.0
        %1027 = vmatpush1.msra.mxu0 0.0
        %1028 = vmatprep.subr.mxu0 0.0
        %1029 = vmatpush1.msra.mxu0 0.0
        %1030 = vmatprep.subr.mxu0 0.0
        %1031 = vmatpush1.msra.mxu0 0.0
        %1032 = vmatprep.subr.mxu0 0.0
        %1033 = vmatpush1.msra.mxu0 0.0
        %1034 = vmatprep.subr.mxu0 0.0
        %1035 = vmatpush1.msra.mxu0 0.0
        %1036 = vmatprep.subr.mxu0 0.0
        %1037 = vmatpush1.msra.mxu0 0.0
        %1038 = vmatprep.subr.mxu0 0.0
        %1039 = vmatpush1.msra.mxu0 0.0
        %1040 = vmatprep.subr.mxu0 0.0
        %1041 = vmatpush1.msra.mxu0 0.0
        %1042 = vmatprep.subr.mxu0 0.0
        %1043 = vmatpush1.msra.mxu0 0.0
        %1044 = vmatprep.subr.mxu0 0.0
        %1045 = vmatpush1.msra.mxu0 0.0
        %1046 = vmatprep.subr.mxu0 0.0
        %1047 = vmatpush1.msra.mxu0 0.0
        %1048 = vmatprep.subr.mxu0 0.0
        %1049 = vmatpush1.msra.mxu0 0.0
        %1050 = vmatprep.subr.mxu0 0.0
        %1051 = vmatpush1.msra.mxu0 0.0
        %1052 = vmatprep.subr.mxu0 0.0
        %1053 = vmatpush1.msra.mxu0 0.0
        %1054 = vmatprep.subr.mxu0 0.0
        %1055 = vmatpush1.msra.mxu0 0.0
        %1056 = vmatprep.subr.mxu0 0.0
        %1057 = vmatpush1.msra.mxu0 0.0
        %1058 = vmatprep.subr.mxu0 0.0
        %1059 = vmatpush1.msra.mxu0 0.0
        %1060 = vmatprep.subr.mxu0 0.0
        %1061 = vmatpush1.msra.mxu0 0.0
        %1062 = vmatprep.subr.mxu0 0.0
        %1063 = vmatpush1.msra.mxu0 0.0
        %1064 = vmatprep.subr.mxu0 0.0
        %1065 = vmatpush1.msra.mxu0 0.0
        %1066 = vmatprep.subr.mxu0 0.0
        %1067 = vmatpush1.msra.mxu0 0.0
        %1068 = vmatprep.subr.mxu0 0.0
        %1069 = vmatpush1.msra.mxu0 0.0
        %1070 = vmatprep.subr.mxu0 0.0
        %1071 = vmatpush1.msra.mxu0 0.0
        %1072 = vmatprep.subr.mxu0 0.0
        %1073 = vmatpush1.msra.mxu0 0.0
        %1074 = vmatprep.subr.mxu0 0.0
        %1075 = vmatpush1.msra.mxu0 0.0
        %1076 = vmatprep.subr.mxu0 0.0
        %1077 = vmatpush1.msra.mxu0 0.0
        %1078 = vmatprep.subr.mxu0 0.0
        %1079 = vmatpush1.msra.mxu0 0.0
        %1080 = vmatprep.subr.mxu0 0.0
        %1081 = vmatpush1.msra.mxu0 0.0
        %1082 = vmatprep.subr.mxu0 0.0
        %1083 = vmatpush1.msra.mxu0 0.0
        %1084 = vmatprep.subr.mxu0 0.0
        %1085 = vmatpush1.msra.mxu0 0.0
        %1086 = vmatprep.mubr.f32.mxu0 0.0
        %1087 = vmatmul.mubr.f32.gmra.mrb[0].mxu0 %v975
        %v1088 = vpop.f32.mrb[0].mxu0
        %v1089 = vadd.f32 0.0, %v1088
        %v1090 = vpop.f32.mrb[0].mxu0
        %v1091 = vadd.f32 0.0, %v1090
        %1092 = vmatprep.mubr.f32.mxu0 0.0
        %1093 = vmatmul.mubr.f32.gmra.mrb[0].mxu0 %v978
        %v1094 = vpop.f32.mrb[0].mxu0
        %v1095 = vadd.f32 0.0, %v1094
        %v1096 = vpop.f32.mrb[0].mxu0
        %v1097 = vadd.f32 0.0, %v1096
        %1098 = vmatprep.mubr.f32.mxu0 0.0
        %1099 = vmatmul.mubr.f32.gmra.mrb[0].mxu0 %v981
        %v1100 = vpop.f32.mrb[0].mxu0
        %v1101 = vadd.f32 0.0, %v1100
        %v1102 = vpop.f32.mrb[0].mxu0
        %v1103 = vadd.f32 0.0, %v1102
        %1104 = vmatprep.mubr.f32.mxu0 0.0
        %1105 = vmatmul.mubr.f32.gmra.mrb[0].mxu0 %v984
        %v1106 = vpop.f32.mrb[0].mxu0
        %v1107 = vadd.f32 0.0, %v1106
        %v1108 = vpop.f32.mrb[0].mxu0
        %v1109 = vadd.f32 0.0, %v1108
        %1110 = vmatprep.mubr.f32.mxu0 0.0
        %1111 = vmatmul.mubr.f32.gmra.mrb[0].mxu0 %v987
        %v1112 = vpop.f32.mrb[0].mxu0
        %v1113 = vadd.f32 0.0, %v1112
        %v1114 = vpop.f32.mrb[0].mxu0
        %v1115 = vadd.f32 0.0, %v1114
        %1116 = vmatprep.mubr.f32.mxu0 0.0
        %1117 = vmatmul.mubr.f32.gmra.mrb[0].mxu0 %v990
        %v1118 = vpop.f32.mrb[0].mxu0
        %v1119 = vadd.f32 0.0, %v1118
        %v1120 = vpop.f32.mrb[0].mxu0
        %v1121 = vadd.f32 0.0, %v1120
        %1122 = vmatprep.mubr.f32.mxu0 0.0
        %1123 = vmatmul.mubr.f32.gmra.mrb[0].mxu0 %v993
        %v1124 = vpop.f32.mrb[0].mxu0
        %v1125 = vadd.f32 0.0, %v1124
        %v1126 = vpop.f32.mrb[0].mxu0
        %v1127 = vadd.f32 0.0, %v1126
        %1128 = vmatprep.mubr.f32.mxu0 0.0
        %1129 = vmatmul.mubr.f32.gmra.mrb[0].mxu0 %v996
        %v1130 = vpop.f32.mrb[0].mxu0
        %v1131 = vadd.f32 0.0, %v1130
        %v1132 = vpop.f32.mrb[0].mxu0
        %v1133 = vadd.f32 0.0, %v1132
        %1134 = vmatprep.mubr.f32.mxu0 0.0
        %1135 = vmatmul.mubr.f32.gmra.mrb[0].mxu0 %v999
        %v1136 = vpop.f32.mrb[0].mxu0
        %v1137 = vadd.f32 0.0, %v1136
        %v1138 = vpop.f32.mrb[0].mxu0
        %v1139 = vadd.f32 0.0, %v1138
        %1140 = vmatprep.mubr.f32.mxu0 0.0
        %1141 = vmatmul.mubr.f32.gmra.mrb[0].mxu0 %v1002
        %v1142 = vpop.f32.mrb[0].mxu0
        %v1143 = vadd.f32 0.0, %v1142
        %v1144 = vpop.f32.mrb[0].mxu0
        %v1145 = vadd.f32 0.0, %v1144
        %1146 = vmatprep.mubr.f32.mxu0 0.0
        %1147 = vmatmul.mubr.f32.gmra.mrb[0].mxu0 %v1005
        %v1148 = vpop.f32.mrb[0].mxu0
        %v1149 = vadd.f32 0.0, %v1148
        %v1150 = vpop.f32.mrb[0].mxu0
        %v1151 = vadd.f32 0.0, %v1150
        %1152 = vmatprep.mubr.f32.mxu0 0.0
        %1153 = vmatmul.mubr.f32.gmra.mrb[0].mxu0 %v1008
        %v1154 = vpop.f32.mrb[0].mxu0
        %v1155 = vadd.f32 0.0, %v1154
        %v1156 = vpop.f32.mrb[0].mxu0
        %v1157 = vadd.f32 0.0, %v1156
        %1158 = vmatprep.mubr.f32.mxu0 0.0
        %1159 = vmatmul.mubr.f32.gmra.mrb[0].mxu0 %v1011
        %v1160 = vpop.f32.mrb[0].mxu0
        %v1161 = vadd.f32 0.0, %v1160
        %v1162 = vpop.f32.mrb[0].mxu0
        %v1163 = vadd.f32 0.0, %v1162
        %1164 = vmatprep.mubr.f32.mxu0 0.0
        %1165 = vmatmul.mubr.f32.gmra.mrb[0].mxu0 %v1014
        %v1166 = vpop.f32.mrb[0].mxu0
        %v1167 = vadd.f32 0.0, %v1166
        %v1168 = vpop.f32.mrb[0].mxu0
        %v1169 = vadd.f32 0.0, %v1168
        %1170 = vmatprep.mubr.f32.mxu0 0.0
        %1171 = vmatmul.mubr.f32.gmra.mrb[0].mxu0 %v1017
        %v1172 = vpop.f32.mrb[0].mxu0
        %v1173 = vadd.f32 0.0, %v1172
        %v1174 = vpop.f32.mrb[0].mxu0
        %v1175 = vadd.f32 0.0, %v1174
        %1176 = vmatprep.mubr.f32.mxu0 0.0
        %1177 = vmatmul.mubr.f32.gmra.mrb[0].mxu0 %v1020
        %v1178 = vpop.f32.mrb[0].mxu0
        %v1179 = vadd.f32 0.0, %v1178
        %v1180 = vpop.f32.mrb[0].mxu0
        %v1181 = vadd.f32 0.0, %v1180
        %1182 = vdwg.mxu0
        %1183 = vmatprep.subr.mxu0 %v886
        %1184 = vmatpush1.msra.mxu0 %v885
        %1185 = vmatprep.subr.mxu0 %v891
        %1186 = vmatpush1.msra.mxu0 %v890
        %1187 = vmatprep.subr.mxu0 0.0
        %1188 = vmatpush1.msra.mxu0 0.0
        %1189 = vmatprep.subr.mxu0 0.0
        %1190 = vmatpush1.msra.mxu0 0.0
        %1191 = vmatprep.subr.mxu0 0.0
        %1192 = vmatpush1.msra.mxu0 0.0
        %1193 = vmatprep.subr.mxu0 0.0
        %1194 = vmatpush1.msra.mxu0 0.0
        %1195 = vmatprep.subr.mxu0 0.0
        %1196 = vmatpush1.msra.mxu0 0.0
        %1197 = vmatprep.subr.mxu0 0.0
        %1198 = vmatpush1.msra.mxu0 0.0
        %1199 = vmatprep.subr.mxu0 0.0
        %1200 = vmatpush1.msra.mxu0 0.0
        %1201 = vmatprep.subr.mxu0 0.0
        %1202 = vmatpush1.msra.mxu0 0.0
        %1203 = vmatprep.subr.mxu0 0.0
        %1204 = vmatpush1.msra.mxu0 0.0
        %1205 = vmatprep.subr.mxu0 0.0
        %1206 = vmatpush1.msra.mxu0 0.0
        %1207 = vmatprep.subr.mxu0 0.0
        %1208 = vmatpush1.msra.mxu0 0.0
        %1209 = vmatprep.subr.mxu0 0.0
        %1210 = vmatpush1.msra.mxu0 0.0
        %1211 = vmatprep.subr.mxu0 0.0
        %1212 = vmatpush1.msra.mxu0 0.0
        %1213 = vmatprep.subr.mxu0 0.0
        %1214 = vmatpush1.msra.mxu0 0.0
        %1215 = vmatprep.subr.mxu0 0.0
        %1216 = vmatpush1.msra.mxu0 0.0
        %1217 = vmatprep.subr.mxu0 0.0
        %1218 = vmatpush1.msra.mxu0 0.0
        %1219 = vmatprep.subr.mxu0 0.0
        %1220 = vmatpush1.msra.mxu0 0.0
        %1221 = vmatprep.subr.mxu0 0.0
        %1222 = vmatpush1.msra.mxu0 0.0
        %1223 = vmatprep.subr.mxu0 0.0
        %1224 = vmatpush1.msra.mxu0 0.0
        %1225 = vmatprep.subr.mxu0 0.0
        %1226 = vmatpush1.msra.mxu0 0.0
        %1227 = vmatprep.subr.mxu0 0.0
        %1228 = vmatpush1.msra.mxu0 0.0
        %1229 = vmatprep.subr.mxu0 0.0
        %1230 = vmatpush1.msra.mxu0 0.0
        %1231 = vmatprep.subr.mxu0 0.0
        %1232 = vmatpush1.msra.mxu0 0.0
        %1233 = vmatprep.subr.mxu0 0.0
        %1234 = vmatpush1.msra.mxu0 0.0
        %1235 = vmatprep.subr.mxu0 0.0
        %1236 = vmatpush1.msra.mxu0 0.0
        %1237 = vmatprep.subr.mxu0 0.0
        %1238 = vmatpush1.msra.mxu0 0.0
        %1239 = vmatprep.subr.mxu0 0.0
        %1240 = vmatpush1.msra.mxu0 0.0
        %1241 = vmatprep.subr.mxu0 0.0
        %1242 = vmatpush1.msra.mxu0 0.0
        %1243 = vmatprep.subr.mxu0 0.0
        %1244 = vmatpush1.msra.mxu0 0.0
        %1245 = vmatprep.subr.mxu0 0.0
        %1246 = vmatpush1.msra.mxu0 0.0
        %1247 = vmatprep.mubr.f32.mxu0 0.0
        %1248 = vmatmul.mubr.f32.gmra.mrb[0].mxu0 %v975
        %v1249 = vpop.f32.mrb[0].mxu0
        %v1250 = vadd.f32 0.0, %v1249
        %v1251 = vpop.f32.mrb[0].mxu0
        %v1252 = vadd.f32 0.0, %v1251
        %1253 = vmatprep.mubr.f32.mxu0 0.0
        %1254 = vmatmul.mubr.f32.gmra.mrb[0].mxu0 %v978
        %v1255 = vpop.f32.mrb[0].mxu0
        %v1256 = vadd.f32 0.0, %v1255
        %v1257 = vpop.f32.mrb[0].mxu0
        %v1258 = vadd.f32 0.0, %v1257
        %1259 = vmatprep.mubr.f32.mxu0 0.0
        %1260 = vmatmul.mubr.f32.gmra.mrb[0].mxu0 %v981
        %v1261 = vpop.f32.mrb[0].mxu0
        %v1262 = vadd.f32 0.0, %v1261
        %v1263 = vpop.f32.mrb[0].mxu0
        %v1264 = vadd.f32 0.0, %v1263
        %1265 = vmatprep.mubr.f32.mxu0 0.0
        %1266 = vmatmul.mubr.f32.gmra.mrb[0].mxu0 %v984
        %v1267 = vpop.f32.mrb[0].mxu0
        %v1268 = vadd.f32 0.0, %v1267
        %v1269 = vpop.f32.mrb[0].mxu0
        %v1270 = vadd.f32 0.0, %v1269
        %1271 = vmatprep.mubr.f32.mxu0 0.0
        %1272 = vmatmul.mubr.f32.gmra.mrb[0].mxu0 %v987
        %v1273 = vpop.f32.mrb[0].mxu0
        %v1274 = vadd.f32 0.0, %v1273
        %v1275 = vpop.f32.mrb[0].mxu0
        %v1276 = vadd.f32 0.0, %v1275
        %1277 = vmatprep.mubr.f32.mxu0 0.0
        %1278 = vmatmul.mubr.f32.gmra.mrb[0].mxu0 %v990
        %v1279 = vpop.f32.mrb[0].mxu0
        %v1280 = vadd.f32 0.0, %v1279
        %v1281 = vpop.f32.mrb[0].mxu0
        %v1282 = vadd.f32 0.0, %v1281
        %1283 = vmatprep.mubr.f32.mxu0 0.0
        %1284 = vmatmul.mubr.f32.gmra.mrb[0].mxu0 %v993
        %v1285 = vpop.f32.mrb[0].mxu0
        %v1286 = vadd.f32 0.0, %v1285
        %v1287 = vpop.f32.mrb[0].mxu0
        %v1288 = vadd.f32 0.0, %v1287
        %1289 = vmatprep.mubr.f32.mxu0 0.0
        %1290 = vmatmul.mubr.f32.gmra.mrb[0].mxu0 %v996
        %v1291 = vpop.f32.mrb[0].mxu0
        %v1292 = vadd.f32 0.0, %v1291
        %v1293 = vpop.f32.mrb[0].mxu0
        %v1294 = vadd.f32 0.0, %v1293
        %1295 = vmatprep.mubr.f32.mxu0 0.0
        %1296 = vmatmul.mubr.f32.gmra.mrb[0].mxu0 %v999
        %v1297 = vpop.f32.mrb[0].mxu0
        %v1298 = vadd.f32 0.0, %v1297
        %v1299 = vpop.f32.mrb[0].mxu0
        %v1300 = vadd.f32 0.0, %v1299
        %1301 = vmatprep.mubr.f32.mxu0 0.0
        %1302 = vmatmul.mubr.f32.gmra.mrb[0].mxu0 %v1002
        %v1303 = vpop.f32.mrb[0].mxu0
        %v1304 = vadd.f32 0.0, %v1303
        %v1305 = vpop.f32.mrb[0].mxu0
        %v1306 = vadd.f32 0.0, %v1305
        %1307 = vmatprep.mubr.f32.mxu0 0.0
        %1308 = vmatmul.mubr.f32.gmra.mrb[0].mxu0 %v1005
        %v1309 = vpop.f32.mrb[0].mxu0
        %v1310 = vadd.f32 0.0, %v1309
        %v1311 = vpop.f32.mrb[0].mxu0
        %v1312 = vadd.f32 0.0, %v1311
        %1313 = vmatprep.mubr.f32.mxu0 0.0
        %1314 = vmatmul.mubr.f32.gmra.mrb[0].mxu0 %v1008
        %v1315 = vpop.f32.mrb[0].mxu0
        %v1316 = vadd.f32 0.0, %v1315
        %v1317 = vpop.f32.mrb[0].mxu0
        %v1318 = vadd.f32 0.0, %v1317
        %1319 = vmatprep.mubr.f32.mxu0 0.0
        %1320 = vmatmul.mubr.f32.gmra.mrb[0].mxu0 %v1011
        %v1321 = vpop.f32.mrb[0].mxu0
        %v1322 = vadd.f32 0.0, %v1321
        %v1323 = vpop.f32.mrb[0].mxu0
        %v1324 = vadd.f32 0.0, %v1323
        %1325 = vmatprep.mubr.f32.mxu0 0.0
        %1326 = vmatmul.mubr.f32.gmra.mrb[0].mxu0 %v1014
        %v1327 = vpop.f32.mrb[0].mxu0
        %v1328 = vadd.f32 0.0, %v1327
        %v1329 = vpop.f32.mrb[0].mxu0
        %v1330 = vadd.f32 0.0, %v1329
        %1331 = vmatprep.mubr.f32.mxu0 0.0
        %1332 = vmatmul.mubr.f32.gmra.mrb[0].mxu0 %v1017
        %v1333 = vpop.f32.mrb[0].mxu0
        %v1334 = vadd.f32 0.0, %v1333
        %v1335 = vpop.f32.mrb[0].mxu0
        %v1336 = vadd.f32 0.0, %v1335
        %1337 = vmatprep.mubr.f32.mxu0 0.0
        %1338 = vmatmul.mubr.f32.gmra.mrb[0].mxu0 %v1020
        %v1339 = vpop.f32.mrb[0].mxu0
        %v1340 = vadd.f32 0.0, %v1339
        %v1341 = vpop.f32.mrb[0].mxu0
        %v1342 = vadd.f32 0.0, %v1341
        %1343 = vdwg.mxu0
        %1344 = vmatprep.subr.mxu0 0.0
        %1345 = vmatpush1.msra.mxu0 %v887
        %1346 = vmatprep.subr.mxu0 0.0
        %1347 = vmatpush1.msra.mxu0 %v892
        %1348 = vmatprep.subr.mxu0 0.0
        %1349 = vmatpush1.msra.mxu0 0.0
        %1350 = vmatprep.subr.mxu0 0.0
        %1351 = vmatpush1.msra.mxu0 0.0
        %1352 = vmatprep.subr.mxu0 0.0
        %1353 = vmatpush1.msra.mxu0 0.0
        %1354 = vmatprep.subr.mxu0 0.0
        %1355 = vmatpush1.msra.mxu0 0.0
        %1356 = vmatprep.subr.mxu0 0.0
        %1357 = vmatpush1.msra.mxu0 0.0
        %1358 = vmatprep.subr.mxu0 0.0
        %1359 = vmatpush1.msra.mxu0 0.0
        %1360 = vmatprep.subr.mxu0 0.0
        %1361 = vmatpush1.msra.mxu0 0.0
        %1362 = vmatprep.subr.mxu0 0.0
        %1363 = vmatpush1.msra.mxu0 0.0
        %1364 = vmatprep.subr.mxu0 0.0
        %1365 = vmatpush1.msra.mxu0 0.0
        %1366 = vmatprep.subr.mxu0 0.0
        %1367 = vmatpush1.msra.mxu0 0.0
        %1368 = vmatprep.subr.mxu0 0.0
        %1369 = vmatpush1.msra.mxu0 0.0
        %1370 = vmatprep.subr.mxu0 0.0
        %1371 = vmatpush1.msra.mxu0 0.0
        %1372 = vmatprep.subr.mxu0 0.0
        %1373 = vmatpush1.msra.mxu0 0.0
        %1374 = vmatprep.subr.mxu0 0.0
        %1375 = vmatpush1.msra.mxu0 0.0
        %1376 = vmatprep.subr.mxu0 0.0
        %1377 = vmatpush1.msra.mxu0 0.0
        %1378 = vmatprep.subr.mxu0 0.0
        %1379 = vmatpush1.msra.mxu0 0.0
        %1380 = vmatprep.subr.mxu0 0.0
        %1381 = vmatpush1.msra.mxu0 0.0
        %1382 = vmatprep.subr.mxu0 0.0
        %1383 = vmatpush1.msra.mxu0 0.0
        %1384 = vmatprep.subr.mxu0 0.0
        %1385 = vmatpush1.msra.mxu0 0.0
        %1386 = vmatprep.subr.mxu0 0.0
        %1387 = vmatpush1.msra.mxu0 0.0
        %1388 = vmatprep.subr.mxu0 0.0
        %1389 = vmatpush1.msra.mxu0 0.0
        %1390 = vmatprep.subr.mxu0 0.0
        %1391 = vmatpush1.msra.mxu0 0.0
        %1392 = vmatprep.subr.mxu0 0.0
        %1393 = vmatpush1.msra.mxu0 0.0
        %1394 = vmatprep.subr.mxu0 0.0
        %1395 = vmatpush1.msra.mxu0 0.0
        %1396 = vmatprep.subr.mxu0 0.0
        %1397 = vmatpush1.msra.mxu0 0.0
        %1398 = vmatprep.subr.mxu0 0.0
        %1399 = vmatpush1.msra.mxu0 0.0
        %1400 = vmatprep.subr.mxu0 0.0
        %1401 = vmatpush1.msra.mxu0 0.0
        %1402 = vmatprep.subr.mxu0 0.0
        %1403 = vmatpush1.msra.mxu0 0.0
        %1404 = vmatprep.subr.mxu0 0.0
        %1405 = vmatpush1.msra.mxu0 0.0
        %1406 = vmatprep.subr.mxu0 0.0
        %1407 = vmatpush1.msra.mxu0 0.0
        %1408 = vmatprep.mubr.f32.mxu0 0.0
        %1409 = vmatmul.mubr.f32.gmra.mrb[0].mxu0 %v975
        %v1410 = vpop.f32.mrb[0].mxu0
        %v1411 = vadd.f32 0.0, %v1410
        %v1412 = vpop.f32.mrb[0].mxu0
        %1413 = vmatprep.mubr.f32.mxu0 0.0
        %1414 = vmatmul.mubr.f32.gmra.mrb[0].mxu0 %v978
        %v1415 = vpop.f32.mrb[0].mxu0
        %v1416 = vadd.f32 0.0, %v1415
        %v1417 = vpop.f32.mrb[0].mxu0
        %1418 = vmatprep.mubr.f32.mxu0 0.0
        %1419 = vmatmul.mubr.f32.gmra.mrb[0].mxu0 %v981
        %v1420 = vpop.f32.mrb[0].mxu0
        %v1421 = vadd.f32 0.0, %v1420
        %v1422 = vpop.f32.mrb[0].mxu0
        %1423 = vmatprep.mubr.f32.mxu0 0.0
        %1424 = vmatmul.mubr.f32.gmra.mrb[0].mxu0 %v984
        %v1425 = vpop.f32.mrb[0].mxu0
        %v1426 = vadd.f32 0.0, %v1425
        %v1427 = vpop.f32.mrb[0].mxu0
        %1428 = vmatprep.mubr.f32.mxu0 0.0
        %1429 = vmatmul.mubr.f32.gmra.mrb[0].mxu0 %v987
        %v1430 = vpop.f32.mrb[0].mxu0
        %v1431 = vadd.f32 0.0, %v1430
        %v1432 = vpop.f32.mrb[0].mxu0
        %1433 = vmatprep.mubr.f32.mxu0 0.0
        %1434 = vmatmul.mubr.f32.gmra.mrb[0].mxu0 %v990
        %v1435 = vpop.f32.mrb[0].mxu0
        %v1436 = vadd.f32 0.0, %v1435
        %v1437 = vpop.f32.mrb[0].mxu0
        %1438 = vmatprep.mubr.f32.mxu0 0.0
        %1439 = vmatmul.mubr.f32.gmra.mrb[0].mxu0 %v993
        %v1440 = vpop.f32.mrb[0].mxu0
        %v1441 = vadd.f32 0.0, %v1440
        %v1442 = vpop.f32.mrb[0].mxu0
        %1443 = vmatprep.mubr.f32.mxu0 0.0
        %1444 = vmatmul.mubr.f32.gmra.mrb[0].mxu0 %v996
        %v1445 = vpop.f32.mrb[0].mxu0
        %v1446 = vadd.f32 0.0, %v1445
        %v1447 = vpop.f32.mrb[0].mxu0
        %1448 = vmatprep.mubr.f32.mxu0 0.0
        %1449 = vmatmul.mubr.f32.gmra.mrb[0].mxu0 %v999
        %v1450 = vpop.f32.mrb[0].mxu0
        %v1451 = vadd.f32 0.0, %v1450
        %v1452 = vpop.f32.mrb[0].mxu0
        %1453 = vmatprep.mubr.f32.mxu0 0.0
        %1454 = vmatmul.mubr.f32.gmra.mrb[0].mxu0 %v1002
        %v1455 = vpop.f32.mrb[0].mxu0
        %v1456 = vadd.f32 0.0, %v1455
        %v1457 = vpop.f32.mrb[0].mxu0
        %1458 = vmatprep.mubr.f32.mxu0 0.0
        %1459 = vmatmul.mubr.f32.gmra.mrb[0].mxu0 %v1005
        %v1460 = vpop.f32.mrb[0].mxu0
        %v1461 = vadd.f32 0.0, %v1460
        %v1462 = vpop.f32.mrb[0].mxu0
        %1463 = vmatprep.mubr.f32.mxu0 0.0
        %1464 = vmatmul.mubr.f32.gmra.mrb[0].mxu0 %v1008
        %v1465 = vpop.f32.mrb[0].mxu0
        %v1466 = vadd.f32 0.0, %v1465
        %v1467 = vpop.f32.mrb[0].mxu0
        %1468 = vmatprep.mubr.f32.mxu0 0.0
        %1469 = vmatmul.mubr.f32.gmra.mrb[0].mxu0 %v1011
        %v1470 = vpop.f32.mrb[0].mxu0
        %v1471 = vadd.f32 0.0, %v1470
        %v1472 = vpop.f32.mrb[0].mxu0
        %1473 = vmatprep.mubr.f32.mxu0 0.0
        %1474 = vmatmul.mubr.f32.gmra.mrb[0].mxu0 %v1014
        %v1475 = vpop.f32.mrb[0].mxu0
        %v1476 = vadd.f32 0.0, %v1475
        %v1477 = vpop.f32.mrb[0].mxu0
        %1478 = vmatprep.mubr.f32.mxu0 0.0
        %1479 = vmatmul.mubr.f32.gmra.mrb[0].mxu0 %v1017
        %v1480 = vpop.f32.mrb[0].mxu0
        %v1481 = vadd.f32 0.0, %v1480
        %v1482 = vpop.f32.mrb[0].mxu0
        %1483 = vmatprep.mubr.f32.mxu0 0.0
        %1484 = vmatmul.mubr.f32.gmra.mrb[0].mxu0 %v1020
        %v1485 = vpop.f32.mrb[0].mxu0
        %v1486 = vadd.f32 0.0, %v1485
        %v1487 = vpop.f32.mrb[0].mxu0
        %1488 = vdwg.mxu0
        %v1489 = vadd.f32 %v893, %v1089
        %v1490 = vadd.f32 %v894, %v1091
        %v1491 = vadd.f32 %v895, %v1250
        %v1492 = vadd.f32 %v896, %v1252
        %v1493 = vadd.f32 %v897, %v1411
        %v1494 = vadd.f32 %v898, %v1095
        %v1495 = vadd.f32 %v899, %v1097
        %v1496 = vadd.f32 %v900, %v1256
        %v1497 = vadd.f32 %v901, %v1258
        %v1498 = vadd.f32 %v902, %v1416
        %v1499 = vadd.f32 %v903, %v1101
        %v1500 = vadd.f32 %v904, %v1103
        %v1501 = vadd.f32 %v905, %v1262
        %v1502 = vadd.f32 %v906, %v1264
        %v1503 = vadd.f32 %v907, %v1421
        %v1504 = vadd.f32 %v908, %v1107
        %v1505 = vadd.f32 %v909, %v1109
        %v1506 = vadd.f32 %v910, %v1268
        %v1507 = vadd.f32 %v911, %v1270
        %v1508 = vadd.f32 %v912, %v1426
        %v1509 = vadd.f32 %v913, %v1113
        %v1510 = vadd.f32 %v914, %v1115
        %v1511 = vadd.f32 %v915, %v1274
        %v1512 = vadd.f32 %v916, %v1276
        %v1513 = vadd.f32 %v917, %v1431
        %v1514 = vadd.f32 %v918, %v1119
        %v1515 = vadd.f32 %v919, %v1121
        %v1516 = vadd.f32 %v920, %v1280
        %v1517 = vadd.f32 %v921, %v1282
        %v1518 = vadd.f32 %v922, %v1436
        %v1519 = vadd.f32 %v923, %v1125
        %v1520 = vadd.f32 %v924, %v1127
        %v1521 = vadd.f32 %v925, %v1286
        %v1522 = vadd.f32 %v926, %v1288
        %v1523 = vadd.f32 %v927, %v1441
        %v1524 = vadd.f32 %v928, %v1131
        %v1525 = vadd.f32 %v929, %v1133
        %v1526 = vadd.f32 %v930, %v1292
        %v1527 = vadd.f32 %v931, %v1294
        %v1528 = vadd.f32 %v932, %v1446
        %v1529 = vadd.f32 %v933, %v1137
        %v1530 = vadd.f32 %v934, %v1139
        %v1531 = vadd.f32 %v935, %v1298
        %v1532 = vadd.f32 %v936, %v1300
        %v1533 = vadd.f32 %v937, %v1451
        %v1534 = vadd.f32 %v938, %v1143
        %v1535 = vadd.f32 %v939, %v1145
        %v1536 = vadd.f32 %v940, %v1304
        %v1537 = vadd.f32 %v941, %v1306
        %v1538 = vadd.f32 %v942, %v1456
        %v1539 = vadd.f32 %v943, %v1149
        %v1540 = vadd.f32 %v944, %v1151
        %v1541 = vadd.f32 %v945, %v1310
        %v1542 = vadd.f32 %v946, %v1312
        %v1543 = vadd.f32 %v947, %v1461
        %v1544 = vadd.f32 %v948, %v1155
        %v1545 = vadd.f32 %v949, %v1157
        %v1546 = vadd.f32 %v950, %v1316
        %v1547 = vadd.f32 %v951, %v1318
        %v1548 = vadd.f32 %v952, %v1466
        %v1549 = vadd.f32 %v953, %v1161
        %v1550 = vadd.f32 %v954, %v1163
        %v1551 = vadd.f32 %v955, %v1322
        %v1552 = vadd.f32 %v956, %v1324
        %v1553 = vadd.f32 %v957, %v1471
        %v1554 = vadd.f32 %v958, %v1167
        %v1555 = vadd.f32 %v959, %v1169
        %v1556 = vadd.f32 %v960, %v1328
        %v1557 = vadd.f32 %v961, %v1330
        %v1558 = vadd.f32 %v962, %v1476
        %v1559 = vadd.f32 %v963, %v1173
        %v1560 = vadd.f32 %v964, %v1175
        %v1561 = vadd.f32 %v965, %v1334
        %v1562 = vadd.f32 %v966, %v1336
        %v1563 = vadd.f32 %v967, %v1481
        %v1564 = vadd.f32 %v968, %v1179
        %v1565 = vadd.f32 %v969, %v1181
        %v1566 = vadd.f32 %v970, %v1340
        %v1567 = vadd.f32 %v971, %v1342
        %v1568 = vadd.f32 %v972, %v1486
        %1569 = vst [vmem:[#allocation2] sm:$0xff] %v1489
        %1570 = vst [vmem:[#allocation2 + $0x8] sm:$0xff] %v1490
        %1571 = vst [vmem:[#allocation2 + $0x10] sm:$0xff] %v1491
        %1572 = vst [vmem:[#allocation2 + $0x18] sm:$0xff] %v1492
        %vm1573 = vcmask 7168
        %1574 = vst.msk [vmem:[#allocation2 + $0x20] sm:$0xff] %vm1573, %v1493
        %1575 = vst [vmem:[#allocation2 + $0x28] sm:$0xff] %v1494
        %1576 = vst [vmem:[#allocation2 + $0x30] sm:$0xff] %v1495
        %1577 = vst [vmem:[#allocation2 + $0x38] sm:$0xff] %v1496
        %1578 = vst [vmem:[#allocation2 + $0x40] sm:$0xff] %v1497
        %1579 = vst.msk [vmem:[#allocation2 + $0x48] sm:$0xff] %vm1573, %v1498
        %1580 = vst [vmem:[#allocation2 + $0x50] sm:$0xff] %v1499
        %1581 = vst [vmem:[#allocation2 + $0x58] sm:$0xff] %v1500
        %1582 = vst [vmem:[#allocation2 + $0x60] sm:$0xff] %v1501
        %1583 = vst [vmem:[#allocation2 + $0x68] sm:$0xff] %v1502
        %1584 = vst.msk [vmem:[#allocation2 + $0x70] sm:$0xff] %vm1573, %v1503
        %1585 = vst [vmem:[#allocation2 + $0x78] sm:$0xff] %v1504
        %1586 = vst [vmem:[#allocation2 + $0x80] sm:$0xff] %v1505
        %1587 = vst [vmem:[#allocation2 + $0x88] sm:$0xff] %v1506
        %1588 = vst [vmem:[#allocation2 + $0x90] sm:$0xff] %v1507
        %1589 = vst.msk [vmem:[#allocation2 + $0x98] sm:$0xff] %vm1573, %v1508
        %1590 = vst [vmem:[#allocation2 + $0xa0] sm:$0xff] %v1509
        %1591 = vst [vmem:[#allocation2 + $0xa8] sm:$0xff] %v1510
        %1592 = vst [vmem:[#allocation2 + $0xb0] sm:$0xff] %v1511
        %1593 = vst [vmem:[#allocation2 + $0xb8] sm:$0xff] %v1512
        %1594 = vst.msk [vmem:[#allocation2 + $0xc0] sm:$0xff] %vm1573, %v1513
        %1595 = vst [vmem:[#allocation2 + $0xc8] sm:$0xff] %v1514
        %1596 = vst [vmem:[#allocation2 + $0xd0] sm:$0xff] %v1515
        %1597 = vst [vmem:[#allocation2 + $0xd8] sm:$0xff] %v1516
        %1598 = vst [vmem:[#allocation2 + $0xe0] sm:$0xff] %v1517
        %1599 = vst.msk [vmem:[#allocation2 + $0xe8] sm:$0xff] %vm1573, %v1518
        %1600 = vst [vmem:[#allocation2 + $0xf0] sm:$0xff] %v1519
        %1601 = vst [vmem:[#allocation2 + $0xf8] sm:$0xff] %v1520
        %1602 = vst [vmem:[#allocation2 + $0x100] sm:$0xff] %v1521
        %1603 = vst [vmem:[#allocation2 + $0x108] sm:$0xff] %v1522
        %1604 = vst.msk [vmem:[#allocation2 + $0x110] sm:$0xff] %vm1573, %v1523
        %1605 = vst [vmem:[#allocation2 + $0x118] sm:$0xff] %v1524
        %1606 = vst [vmem:[#allocation2 + $0x120] sm:$0xff] %v1525
        %1607 = vst [vmem:[#allocation2 + $0x128] sm:$0xff] %v1526
        %1608 = vst [vmem:[#allocation2 + $0x130] sm:$0xff] %v1527
        %1609 = vst.msk [vmem:[#allocation2 + $0x138] sm:$0xff] %vm1573, %v1528
        %1610 = vst [vmem:[#allocation2 + $0x140] sm:$0xff] %v1529
        %1611 = vst [vmem:[#allocation2 + $0x148] sm:$0xff] %v1530
        %1612 = vst [vmem:[#allocation2 + $0x150] sm:$0xff] %v1531
        %1613 = vst [vmem:[#allocation2 + $0x158] sm:$0xff] %v1532
        %1614 = vst.msk [vmem:[#allocation2 + $0x160] sm:$0xff] %vm1573, %v1533
        %1615 = vst [vmem:[#allocation2 + $0x168] sm:$0xff] %v1534
        %1616 = vst [vmem:[#allocation2 + $0x170] sm:$0xff] %v1535
        %1617 = vst [vmem:[#allocation2 + $0x178] sm:$0xff] %v1536
        %1618 = vst [vmem:[#allocation2 + $0x180] sm:$0xff] %v1537
        %1619 = vst.msk [vmem:[#allocation2 + $0x188] sm:$0xff] %vm1573, %v1538
        %1620 = vst [vmem:[#allocation2 + $0x190] sm:$0xff] %v1539
        %1621 = vst [vmem:[#allocation2 + $0x198] sm:$0xff] %v1540
        %1622 = vst [vmem:[#allocation2 + $0x1a0] sm:$0xff] %v1541
        %1623 = vst [vmem:[#allocation2 + $0x1a8] sm:$0xff] %v1542
        %1624 = vst.msk [vmem:[#allocation2 + $0x1b0] sm:$0xff] %vm1573, %v1543
        %1625 = vst [vmem:[#allocation2 + $0x1b8] sm:$0xff] %v1544
        %1626 = vst [vmem:[#allocation2 + $0x1c0] sm:$0xff] %v1545
        %1627 = vst [vmem:[#allocation2 + $0x1c8] sm:$0xff] %v1546
        %1628 = vst [vmem:[#allocation2 + $0x1d0] sm:$0xff] %v1547
        %1629 = vst.msk [vmem:[#allocation2 + $0x1d8] sm:$0xff] %vm1573, %v1548
        %1630 = vst [vmem:[#allocation2 + $0x1e0] sm:$0xff] %v1549
        %1631 = vst [vmem:[#allocation2 + $0x1e8] sm:$0xff] %v1550
        %1632 = vst [vmem:[#allocation2 + $0x1f0] sm:$0xff] %v1551
        %1633 = vst [vmem:[#allocation2 + $0x1f8] sm:$0xff] %v1552
        %1634 = vst.msk [vmem:[#allocation2 + $0x200] sm:$0xff] %vm1573, %v1553
        %1635 = vst [vmem:[#allocation2 + $0x208] sm:$0xff] %v1554
        %1636 = vst [vmem:[#allocation2 + $0x210] sm:$0xff] %v1555
        %1637 = vst [vmem:[#allocation2 + $0x218] sm:$0xff] %v1556
        %1638 = vst [vmem:[#allocation2 + $0x220] sm:$0xff] %v1557
        %1639 = vst.msk [vmem:[#allocation2 + $0x228] sm:$0xff] %vm1573, %v1558
        %1640 = vst [vmem:[#allocation2 + $0x230] sm:$0xff] %v1559
        %1641 = vst [vmem:[#allocation2 + $0x238] sm:$0xff] %v1560
        %1642 = vst [vmem:[#allocation2 + $0x240] sm:$0xff] %v1561
        %1643 = vst [vmem:[#allocation2 + $0x248] sm:$0xff] %v1562
        %1644 = vst.msk [vmem:[#allocation2 + $0x250] sm:$0xff] %vm1573, %v1563
        %1645 = vst [vmem:[#allocation2 + $0x258] sm:$0xff] %v1564
        %1646 = vst [vmem:[#allocation2 + $0x260] sm:$0xff] %v1565
        %1647 = vst [vmem:[#allocation2 + $0x268] sm:$0xff] %v1566
        %1648 = vst [vmem:[#allocation2 + $0x270] sm:$0xff] %v1567
        %1649 = vst.msk [vmem:[#allocation2 + $0x278] sm:$0xff] %vm1573, %v1568
        %p1650 = scmp.eq.s32.totalorder %s22, 16
        // Predicated region
        $region79: #{band_projection.1} parent=69 // pred_check
          %p1651 = pneg %p1650
        $region80: #{band_projection.1} parent=69 // pred_check_branch
          %1653 = sbr.rel (%p1651) target = $region82
        $region81: #{band_projection.1} parent=69 // pred_region
          %v1654 = vld [vmem:[#allocation2] sm:$0xff]
          %v1655 = vld [vmem:[#allocation2 + $0x8] sm:$0xff]
          %v1656 = vld [vmem:[#allocation2 + $0x10] sm:$0xff]
          %v1657 = vld [vmem:[#allocation2 + $0x18] sm:$0xff]
          %v1658 = vld [vmem:[#allocation2 + $0x20] sm:$0xff]
          %v1659 = vld [vmem:[#allocation2 + $0x28] sm:$0xff]
          %v1660 = vld [vmem:[#allocation2 + $0x30] sm:$0xff]
          %v1661 = vld [vmem:[#allocation2 + $0x38] sm:$0xff]
          %v1662 = vld [vmem:[#allocation2 + $0x40] sm:$0xff]
          %v1663 = vld [vmem:[#allocation2 + $0x48] sm:$0xff]
          %v1664 = vld [vmem:[#allocation2 + $0x50] sm:$0xff]
          %v1665 = vld [vmem:[#allocation2 + $0x58] sm:$0xff]
          %v1666 = vld [vmem:[#allocation2 + $0x60] sm:$0xff]
          %v1667 = vld [vmem:[#allocation2 + $0x68] sm:$0xff]
          %v1668 = vld [vmem:[#allocation2 + $0x70] sm:$0xff]
          %v1669 = vld [vmem:[#allocation2 + $0x78] sm:$0xff]
          %v1670 = vld [vmem:[#allocation2 + $0x80] sm:$0xff]
          %v1671 = vld [vmem:[#allocation2 + $0x88] sm:$0xff]
          %v1672 = vld [vmem:[#allocation2 + $0x90] sm:$0xff]
          %v1673 = vld [vmem:[#allocation2 + $0x98] sm:$0xff]
          %v1674 = vld [vmem:[#allocation2 + $0xa0] sm:$0xff]
          %v1675 = vld [vmem:[#allocation2 + $0xa8] sm:$0xff]
          %v1676 = vld [vmem:[#allocation2 + $0xb0] sm:$0xff]
          %v1677 = vld [vmem:[#allocation2 + $0xb8] sm:$0xff]
          %v1678 = vld [vmem:[#allocation2 + $0xc0] sm:$0xff]
          %v1679 = vld [vmem:[#allocation2 + $0xc8] sm:$0xff]
          %v1680 = vld [vmem:[#allocation2 + $0xd0] sm:$0xff]
          %v1681 = vld [vmem:[#allocation2 + $0xd8] sm:$0xff]
          %v1682 = vld [vmem:[#allocation2 + $0xe0] sm:$0xff]
          %v1683 = vld [vmem:[#allocation2 + $0xe8] sm:$0xff]
          %v1684 = vld [vmem:[#allocation2 + $0xf0] sm:$0xff]
          %v1685 = vld [vmem:[#allocation2 + $0xf8] sm:$0xff]
          %v1686 = vld [vmem:[#allocation2 + $0x100] sm:$0xff]
          %v1687 = vld [vmem:[#allocation2 + $0x108] sm:$0xff]
          %v1688 = vld [vmem:[#allocation2 + $0x110] sm:$0xff]
          %v1689 = vld [vmem:[#allocation2 + $0x118] sm:$0xff]
          %v1690 = vld [vmem:[#allocation2 + $0x120] sm:$0xff]
          %v1691 = vld [vmem:[#allocation2 + $0x128] sm:$0xff]
          %v1692 = vld [vmem:[#allocation2 + $0x130] sm:$0xff]
          %v1693 = vld [vmem:[#allocation2 + $0x138] sm:$0xff]
          %v1694 = vld [vmem:[#allocation2 + $0x140] sm:$0xff]
          %v1695 = vld [vmem:[#allocation2 + $0x148] sm:$0xff]
          %v1696 = vld [vmem:[#allocation2 + $0x150] sm:$0xff]
          %v1697 = vld [vmem:[#allocation2 + $0x158] sm:$0xff]
          %v1698 = vld [vmem:[#allocation2 + $0x160] sm:$0xff]
          %v1699 = vld [vmem:[#allocation2 + $0x168] sm:$0xff]
          %v1700 = vld [vmem:[#allocation2 + $0x170] sm:$0xff]
          %v1701 = vld [vmem:[#allocation2 + $0x178] sm:$0xff]
          %v1702 = vld [vmem:[#allocation2 + $0x180] sm:$0xff]
          %v1703 = vld [vmem:[#allocation2 + $0x188] sm:$0xff]
          %v1704 = vld [vmem:[#allocation2 + $0x190] sm:$0xff]
          %v1705 = vld [vmem:[#allocation2 + $0x198] sm:$0xff]
          %v1706 = vld [vmem:[#allocation2 + $0x1a0] sm:$0xff]
          %v1707 = vld [vmem:[#allocation2 + $0x1a8] sm:$0xff]
          %v1708 = vld [vmem:[#allocation2 + $0x1b0] sm:$0xff]
          %v1709 = vld [vmem:[#allocation2 + $0x1b8] sm:$0xff]
          %v1710 = vld [vmem:[#allocation2 + $0x1c0] sm:$0xff]
          %v1711 = vld [vmem:[#allocation2 + $0x1c8] sm:$0xff]
          %v1712 = vld [vmem:[#allocation2 + $0x1d0] sm:$0xff]
          %v1713 = vld [vmem:[#allocation2 + $0x1d8] sm:$0xff]
          %v1714 = vld [vmem:[#allocation2 + $0x1e0] sm:$0xff]
          %v1715 = vld [vmem:[#allocation2 + $0x1e8] sm:$0xff]
          %v1716 = vld [vmem:[#allocation2 + $0x1f0] sm:$0xff]
          %v1717 = vld [vmem:[#allocation2 + $0x1f8] sm:$0xff]
          %v1718 = vld [vmem:[#allocation2 + $0x200] sm:$0xff]
          %v1719 = vld [vmem:[#allocation2 + $0x208] sm:$0xff]
          %v1720 = vld [vmem:[#allocation2 + $0x210] sm:$0xff]
          %v1721 = vld [vmem:[#allocation2 + $0x218] sm:$0xff]
          %v1722 = vld [vmem:[#allocation2 + $0x220] sm:$0xff]
          %v1723 = vld [vmem:[#allocation2 + $0x228] sm:$0xff]
          %v1724 = vld [vmem:[#allocation2 + $0x230] sm:$0xff]
          %v1725 = vld [vmem:[#allocation2 + $0x238] sm:$0xff]
          %v1726 = vld [vmem:[#allocation2 + $0x240] sm:$0xff]
          %v1727 = vld [vmem:[#allocation2 + $0x248] sm:$0xff]
          %v1728 = vld [vmem:[#allocation2 + $0x250] sm:$0xff]
          %v1729 = vld [vmem:[#allocation2 + $0x258] sm:$0xff]
          %v1730 = vld [vmem:[#allocation2 + $0x260] sm:$0xff]
          %v1731 = vld [vmem:[#allocation2 + $0x268] sm:$0xff]
          %v1732 = vld [vmem:[#allocation2 + $0x270] sm:$0xff]
          %v1733 = vld [vmem:[#allocation2 + $0x278] sm:$0xff]
          %v1734 = vld [vmem:[%s3] sm:$0x1f]
          %v1736 = vlaneseq
          %v1737 = vshrl.u32 %v1736, 7
          %v1738 = vsub.s32 0, %v1737
          %v1739 = vrot.slane %v1734, %v1738
          %v1740 = vlaneseq
          %v1741 = vshrl.u32 %v1740, 7
          %v1742 = vsub.s32 1, %v1741
          %v1743 = vrot.slane %v1734, %v1742
          %v1744 = vlaneseq
          %v1745 = vshrl.u32 %v1744, 7
          %v1746 = vsub.s32 2, %v1745
          %v1747 = vrot.slane %v1734, %v1746
          %v1748 = vlaneseq
          %v1749 = vshrl.u32 %v1748, 7
          %v1750 = vsub.s32 3, %v1749
          %v1751 = vrot.slane %v1734, %v1750
          %v1752 = vlaneseq
          %v1753 = vshrl.u32 %v1752, 7
          %v1754 = vsub.s32 4, %v1753
          %v1755 = vrot.slane %v1734, %v1754
          %v1761 = vadd.f32 %v1654, %v1739
          %v1762 = vadd.f32 %v1655, %v1743
          %v1763 = vadd.f32 %v1656, %v1747
          %v1764 = vadd.f32 %v1657, %v1751
          %v1765 = vadd.f32 %v1658, %v1755
          %v1766 = vadd.f32 %v1659, %v1739
          %v1767 = vadd.f32 %v1660, %v1743
          %v1768 = vadd.f32 %v1661, %v1747
          %v1769 = vadd.f32 %v1662, %v1751
          %v1770 = vadd.f32 %v1663, %v1755
          %v1771 = vadd.f32 %v1664, %v1739
          %v1772 = vadd.f32 %v1665, %v1743
          %v1773 = vadd.f32 %v1666, %v1747
          %v1774 = vadd.f32 %v1667, %v1751
          %v1775 = vadd.f32 %v1668, %v1755
          %v1776 = vadd.f32 %v1669, %v1739
          %v1777 = vadd.f32 %v1670, %v1743
          %v1778 = vadd.f32 %v1671, %v1747
          %v1779 = vadd.f32 %v1672, %v1751
          %v1780 = vadd.f32 %v1673, %v1755
          %v1781 = vadd.f32 %v1674, %v1739
          %v1782 = vadd.f32 %v1675, %v1743
          %v1783 = vadd.f32 %v1676, %v1747
          %v1784 = vadd.f32 %v1677, %v1751
          %v1785 = vadd.f32 %v1678, %v1755
          %v1786 = vadd.f32 %v1679, %v1739
          %v1787 = vadd.f32 %v1680, %v1743
          %v1788 = vadd.f32 %v1681, %v1747
          %v1789 = vadd.f32 %v1682, %v1751
          %v1790 = vadd.f32 %v1683, %v1755
          %v1791 = vadd.f32 %v1684, %v1739
          %v1792 = vadd.f32 %v1685, %v1743
          %v1793 = vadd.f32 %v1686, %v1747
          %v1794 = vadd.f32 %v1687, %v1751
          %v1795 = vadd.f32 %v1688, %v1755
          %v1796 = vadd.f32 %v1689, %v1739
          %v1797 = vadd.f32 %v1690, %v1743
          %v1798 = vadd.f32 %v1691, %v1747
          %v1799 = vadd.f32 %v1692, %v1751
          %v1800 = vadd.f32 %v1693, %v1755
          %v1801 = vadd.f32 %v1694, %v1739
          %v1802 = vadd.f32 %v1695, %v1743
          %v1803 = vadd.f32 %v1696, %v1747
          %v1804 = vadd.f32 %v1697, %v1751
          %v1805 = vadd.f32 %v1698, %v1755
          %v1806 = vadd.f32 %v1699, %v1739
          %v1807 = vadd.f32 %v1700, %v1743
          %v1808 = vadd.f32 %v1701, %v1747
          %v1809 = vadd.f32 %v1702, %v1751
          %v1810 = vadd.f32 %v1703, %v1755
          %v1811 = vadd.f32 %v1704, %v1739
          %v1812 = vadd.f32 %v1705, %v1743
          %v1813 = vadd.f32 %v1706, %v1747
          %v1814 = vadd.f32 %v1707, %v1751
          %v1815 = vadd.f32 %v1708, %v1755
          %v1816 = vadd.f32 %v1709, %v1739
          %v1817 = vadd.f32 %v1710, %v1743
          %v1818 = vadd.f32 %v1711, %v1747
          %v1819 = vadd.f32 %v1712, %v1751
          %v1820 = vadd.f32 %v1713, %v1755
          %v1821 = vadd.f32 %v1714, %v1739
          %v1822 = vadd.f32 %v1715, %v1743
          %v1823 = vadd.f32 %v1716, %v1747
          %v1824 = vadd.f32 %v1717, %v1751
          %v1825 = vadd.f32 %v1718, %v1755
          %v1826 = vadd.f32 %v1719, %v1739
          %v1827 = vadd.f32 %v1720, %v1743
          %v1828 = vadd.f32 %v1721, %v1747
          %v1829 = vadd.f32 %v1722, %v1751
          %v1830 = vadd.f32 %v1723, %v1755
          %v1831 = vadd.f32 %v1724, %v1739
          %v1832 = vadd.f32 %v1725, %v1743
          %v1833 = vadd.f32 %v1726, %v1747
          %v1834 = vadd.f32 %v1727, %v1751
          %v1835 = vadd.f32 %v1728, %v1755
          %v1836 = vadd.f32 %v1729, %v1739
          %v1837 = vadd.f32 %v1730, %v1743
          %v1838 = vadd.f32 %v1731, %v1747
          %v1839 = vadd.f32 %v1732, %v1751
          %v1840 = vadd.f32 %v1733, %v1755
          %1841 = vst [vmem:[%s542] sm:$0xff] %v1761
          %1842 = vst [vmem:[%s542 + $0x8] sm:$0xff] %v1762
          %1843 = vst [vmem:[%s542 + $0x10] sm:$0xff] %v1763
          %1844 = vst [vmem:[%s542 + $0x18] sm:$0xff] %v1764
          %1845 = vst.msk [vmem:[%s542 + $0x20] sm:$0xff] %vm1573, %v1765
          %1846 = vst [vmem:[%s542 + $0x28] sm:$0xff] %v1766
          %1847 = vst [vmem:[%s542 + $0x30] sm:$0xff] %v1767
          %1848 = vst [vmem:[%s542 + $0x38] sm:$0xff] %v1768
          %1849 = vst [vmem:[%s542 + $0x40] sm:$0xff] %v1769
          %1850 = vst.msk [vmem:[%s542 + $0x48] sm:$0xff] %vm1573, %v1770
          %1851 = vst [vmem:[%s542 + $0x50] sm:$0xff] %v1771
          %1852 = vst [vmem:[%s542 + $0x58] sm:$0xff] %v1772
          %1853 = vst [vmem:[%s542 + $0x60] sm:$0xff] %v1773
          %1854 = vst [vmem:[%s542 + $0x68] sm:$0xff] %v1774
          %1855 = vst.msk [vmem:[%s542 + $0x70] sm:$0xff] %vm1573, %v1775
          %1856 = vst [vmem:[%s542 + $0x78] sm:$0xff] %v1776
          %1857 = vst [vmem:[%s542 + $0x80] sm:$0xff] %v1777
          %1858 = vst [vmem:[%s542 + $0x88] sm:$0xff] %v1778
          %1859 = vst [vmem:[%s542 + $0x90] sm:$0xff] %v1779
          %1860 = vst.msk [vmem:[%s542 + $0x98] sm:$0xff] %vm1573, %v1780
          %1861 = vst [vmem:[%s542 + $0xa0] sm:$0xff] %v1781
          %1862 = vst [vmem:[%s542 + $0xa8] sm:$0xff] %v1782
          %1863 = vst [vmem:[%s542 + $0xb0] sm:$0xff] %v1783
          %1864 = vst [vmem:[%s542 + $0xb8] sm:$0xff] %v1784
          %1865 = vst.msk [vmem:[%s542 + $0xc0] sm:$0xff] %vm1573, %v1785
          %1866 = vst [vmem:[%s542 + $0xc8] sm:$0xff] %v1786
          %1867 = vst [vmem:[%s542 + $0xd0] sm:$0xff] %v1787
          %1868 = vst [vmem:[%s542 + $0xd8] sm:$0xff] %v1788
          %1869 = vst [vmem:[%s542 + $0xe0] sm:$0xff] %v1789
          %1870 = vst.msk [vmem:[%s542 + $0xe8] sm:$0xff] %vm1573, %v1790
          %1871 = vst [vmem:[%s542 + $0xf0] sm:$0xff] %v1791
          %1872 = vst [vmem:[%s542 + $0xf8] sm:$0xff] %v1792
          %1873 = vst [vmem:[%s542 + $0x100] sm:$0xff] %v1793
          %1874 = vst [vmem:[%s542 + $0x108] sm:$0xff] %v1794
          %1875 = vst.msk [vmem:[%s542 + $0x110] sm:$0xff] %vm1573, %v1795
          %1876 = vst [vmem:[%s542 + $0x118] sm:$0xff] %v1796
          %1877 = vst [vmem:[%s542 + $0x120] sm:$0xff] %v1797
          %1878 = vst [vmem:[%s542 + $0x128] sm:$0xff] %v1798
          %1879 = vst [vmem:[%s542 + $0x130] sm:$0xff] %v1799
          %1880 = vst.msk [vmem:[%s542 + $0x138] sm:$0xff] %vm1573, %v1800
          %1881 = vst [vmem:[%s542 + $0x140] sm:$0xff] %v1801
          %1882 = vst [vmem:[%s542 + $0x148] sm:$0xff] %v1802
          %1883 = vst [vmem:[%s542 + $0x150] sm:$0xff] %v1803
          %1884 = vst [vmem:[%s542 + $0x158] sm:$0xff] %v1804
          %1885 = vst.msk [vmem:[%s542 + $0x160] sm:$0xff] %vm1573, %v1805
          %1886 = vst [vmem:[%s542 + $0x168] sm:$0xff] %v1806
          %1887 = vst [vmem:[%s542 + $0x170] sm:$0xff] %v1807
          %1888 = vst [vmem:[%s542 + $0x178] sm:$0xff] %v1808
          %1889 = vst [vmem:[%s542 + $0x180] sm:$0xff] %v1809
          %1890 = vst.msk [vmem:[%s542 + $0x188] sm:$0xff] %vm1573, %v1810
          %1891 = vst [vmem:[%s542 + $0x190] sm:$0xff] %v1811
          %1892 = vst [vmem:[%s542 + $0x198] sm:$0xff] %v1812
          %1893 = vst [vmem:[%s542 + $0x1a0] sm:$0xff] %v1813
          %1894 = vst [vmem:[%s542 + $0x1a8] sm:$0xff] %v1814
          %1895 = vst.msk [vmem:[%s542 + $0x1b0] sm:$0xff] %vm1573, %v1815
          %1896 = vst [vmem:[%s542 + $0x1b8] sm:$0xff] %v1816
          %1897 = vst [vmem:[%s542 + $0x1c0] sm:$0xff] %v1817
          %1898 = vst [vmem:[%s542 + $0x1c8] sm:$0xff] %v1818
          %1899 = vst [vmem:[%s542 + $0x1d0] sm:$0xff] %v1819
          %1900 = vst.msk [vmem:[%s542 + $0x1d8] sm:$0xff] %vm1573, %v1820
          %1901 = vst [vmem:[%s542 + $0x1e0] sm:$0xff] %v1821
          %1902 = vst [vmem:[%s542 + $0x1e8] sm:$0xff] %v1822
          %1903 = vst [vmem:[%s542 + $0x1f0] sm:$0xff] %v1823
          %1904 = vst [vmem:[%s542 + $0x1f8] sm:$0xff] %v1824
          %1905 = vst.msk [vmem:[%s542 + $0x200] sm:$0xff] %vm1573, %v1825
          %1906 = vst [vmem:[%s542 + $0x208] sm:$0xff] %v1826
          %1907 = vst [vmem:[%s542 + $0x210] sm:$0xff] %v1827
          %1908 = vst [vmem:[%s542 + $0x218] sm:$0xff] %v1828
          %1909 = vst [vmem:[%s542 + $0x220] sm:$0xff] %v1829
          %1910 = vst.msk [vmem:[%s542 + $0x228] sm:$0xff] %vm1573, %v1830
          %1911 = vst [vmem:[%s542 + $0x230] sm:$0xff] %v1831
          %1912 = vst [vmem:[%s542 + $0x238] sm:$0xff] %v1832
          %1913 = vst [vmem:[%s542 + $0x240] sm:$0xff] %v1833
          %1914 = vst [vmem:[%s542 + $0x248] sm:$0xff] %v1834
          %1915 = vst.msk [vmem:[%s542 + $0x250] sm:$0xff] %vm1573, %v1835
          %1916 = vst [vmem:[%s542 + $0x258] sm:$0xff] %v1836
          %1917 = vst [vmem:[%s542 + $0x260] sm:$0xff] %v1837
          %1918 = vst [vmem:[%s542 + $0x268] sm:$0xff] %v1838
          %1919 = vst [vmem:[%s542 + $0x270] sm:$0xff] %v1839
          %1920 = vst.msk [vmem:[%s542 + $0x278] sm:$0xff] %vm1573, %v1840
        $region82: #{band_projection.1} parent=69 // pred_fallthru
          _
        %s1921 = smul.u32 16, %s21
        %p1922 = scmp.lt.s32.totalorder %s20, 1
        %s1923 = scalar_select %p1922, %s20, 1
        %p1924 = scmp.lt.s32.totalorder %s1921, 15
        %s1925 = scalar_select %p1924, %s1921, 15
        %s1926 = smul.addr %s1925, 5
        %s1927 = smul.addr %s1923, 80
        %s1928 = sadd.s32 %s1926, %s1927
        %s1929 = smul.addr %s1928, 8
        %s1930 = scalar_lea.vmem %s4, %s1929
        // Predicated region
        $region83: #{band_projection.1} parent=69 // pred_check
          %p1931 = pneg %p152
        $region84: #{band_projection.1} parent=69 // pred_check_branch
          %1933 = sbr.rel (%p1931) target = $region86
        $region85: #{band_projection.1} parent=69 // pred_region
          %s1934 = smul.u32 16, %s21
        $region86: #{band_projection.1} parent=69 // pred_fallthru
          _
      $region70: #{band_projection.1} parent=5 // pred_fallthru
        _
      %p1935 = scmp.le.s32.totalorder 2, %s10
      // Predicated region
      $region87: #{band_projection.1} parent=5 // pred_check
        %p1936 = pneg %p1935
      $region88: #{band_projection.1} parent=5 // pred_check_branch
        %1938 = sbr.rel (%p1936) target = $region90
      $region89: #{band_projection.1} parent=5 // pred_region
        %s1939 = ssub.s32 %s10, 2
        // Predicated region
        $region91: #{band_projection.1} parent=89 // pred_check
          %p1940 = pneg %p158
        $region92: #{band_projection.1} parent=89 // pred_check_branch
          %1942 = sbr.rel (%p1940) target = $region94
        $region93: #{band_projection.1} parent=89 // pred_region
          %s1943 = smul.u32 16, %s24
          %p1944 = scmp.lt.s32.totalorder %s23, 1
          %s1945 = scalar_select %p1944, %s23, 1
          %p1946 = scmp.lt.s32.totalorder %s1943, 15
          %s1947 = scalar_select %p1946, %s1943, 15
          %s1948 = smul.addr %s1947, 5
          %s1949 = smul.addr %s1945, 80
          %s1950 = sadd.s32 %s1948, %s1949
          %s1951 = smul.addr %s1950, 8
          %s1952 = scalar_lea.vmem %s4, %s1951
        $region94: #{band_projection.1} parent=89 // pred_fallthru
          _
      $region90: #{band_projection.1} parent=5 // pred_fallthru
        _
    $region6: #{band_projection.1} parent=1 // loop_footer
      %s14 = sadd.s32 1, %s10
    $region7: #{band_projection.1} parent=1 // loop_footer_branch
      %9 = sbr.rel target = $region3
    $region8: #{band_projection.1} parent=1 // loop_exit
      _

</llo_original>
